<compile_context>
chip_gen: v5e
topology: v5e:2x2
jax: 0.10.0
libtpu: 0.0.40
codegen_flags: <defaults>
</compile_context>

<pallas_src>
import functools

import numpy as np
import jax
import jax.numpy as jnp
from jax import lax
from jax.experimental import pallas as pl
from jax.experimental.pallas import tpu as pltpu


# ------------------------------- Pallas kernel -------------------------------

def _ssa_fused_kernel(x_ref, m_ref, attw_ref, attb_ref,
                      w1_ref, s1_ref, sh1_ref,
                      w2_ref, s2_ref, sh2_ref,
                      tap_ref, o_ref, *, C, Cpad, Mpad, H, W, Bblk):
    """Fused SpatialSeparatedAttention forward for one batch block.

    Activations are channel-major with H*W (and B*H*W for the convs) on the lane axis.
    A 3x3 conv is ONE (Cout, 9*Cin) @ (9*Cin, Bblk*HW) bf16 matmul; the patch matrix is
    built from lane rolls of the images concatenated along lanes, and the Bblk-tiled tap
    validity masks zero both row wrap-around and cross-image leakage (in-kernel halo).
    """
    HW = H * W
    BC = Bblk * C
    N = Bblk * HW

    x = x_ref[...].astype(jnp.float32)                       # (Bblk*C, HW)
    taps = tap_ref[...]                                      # (9, Bblk*HW) 0/1 validity masks

    # --- channel attention: global max+avg pool -> ONE block-diagonal matmul -> sigmoid ---
    mx = jnp.max(x, axis=1, keepdims=True)                   # (BC, 1)
    av = jnp.mean(x, axis=1, keepdims=True)                  # (BC, 1)
    pooled = jnp.concatenate([mx, av], axis=0)               # (2*BC, 1)
    # Broadcast along lanes so the dot has a full-lane N (the MXU pads N<128 to a tile
    # anyway); lane 0 of the product is the matrix-vector result.  Replaces the serial
    # per-channel FMA loop flagged by the review.
    pooled_b = jnp.broadcast_to(pooled, (2 * BC, 128))
    logits = jnp.dot(attw_ref[...], pooled_b,
                     preferred_element_type=jnp.float32)[:, 0:1] + attb_ref[...]
    gates = jax.nn.sigmoid(logits)                           # (3*BC, 1) = [bg | fg | mix]
    bg_g, fg_g, mix_g = gates[:BC], gates[BC:2 * BC], gates[2 * BC:]

    def pad_rows(h, rows_to):                                # sublane-align Cin groups
        r = h.shape[0]
        if rows_to > r:
            h = jnp.concatenate(
                [h, jnp.zeros((rows_to - r, h.shape[1]), h.dtype)], axis=0)
        return h

    # --- foreground-gated input, reorganised to conv layout (Cin, Bblk*HW) ----------------
    x_fg = fg_g * x                                          # (BC, HW)
    xc = jnp.concatenate([x_fg[b * C:(b + 1) * C, :] for b in range(Bblk)], axis=1)
    xc = pad_rows(xc, Cpad)                                  # (Cpad, N)

    # --- 3x3 conv as a single K = 9*Cin bf16 matmul ----------------------------------------
    def conv3x3(h, w16):                                     # h: f32 (Cin, N); w16: bf16
        cols = []
        for t in range(9):
            dy, dx = t // 3 - 1, t % 3 - 1
            s = dy * W + dx                                  # flattened spatial shift
            col = h if s == 0 else jnp.roll(h, -s, axis=1) * taps[t:t + 1, :]
            cols.append(col.astype(jnp.bfloat16))            # bf16 patches: half the vregs
        patches = jnp.concatenate(cols, axis=0)              # (9*Cin, N)
        return jnp.dot(w16, patches, preferred_element_type=jnp.float32)

    def bn_elu(y, scale, shift):                             # folded eval BatchNorm + ELU(1)
        y = y * scale + shift
        return jnp.where(y > 0, y, jnp.exp(jnp.minimum(y, 0.0)) - 1.0)

    # learning_block(foreground_gate(x)): 2x [conv3x3(pad=1, no bias) -> BN -> ELU]
    h1 = bn_elu(conv3x3(xc, w1_ref[...]), s1_ref[...], sh1_ref[...])        # (mid, N)
    fgc = bn_elu(conv3x3(pad_rows(h1, Mpad), w2_ref[...]),
                 s2_ref[...], sh2_ref[...])                                  # (C, N)

    # --- back to the (Bblk*C, HW) row layout for a full-sublane, lane-dense store ----------
    fg = jnp.concatenate([fgc[:, b * HW:(b + 1) * HW] for b in range(Bblk)], axis=0)
    m = m_ref[...].astype(jnp.float32)                       # (Bblk, HW) resized+blurred mask
    mfull = jnp.concatenate(
        [jnp.broadcast_to(m[b:b + 1, :], (C, HW)) for b in range(Bblk)], axis=0)

    # blend: mask*(foreground + mix_gate*x) + (1-mask)*(bg_gate*x)
    out = mfull * (fg + mix_g * x) + (1.0 - mfull) * (bg_g * x)
    o_ref[...] = out.astype(o_ref.dtype)


# ------------------------- host-side constant helpers -------------------------

def _resize_matrix_align_corners(out_size, in_size):
    i = np.arange(out_size, dtype=np.float64)
    src = i * (in_size - 1) / (out_size - 1) if out_size > 1 else np.zeros_like(i)
    lo = np.clip(np.floor(src).astype(np.int64), 0, in_size - 1)
    hi = np.clip(lo + 1, 0, in_size - 1)
    frac = src - lo
    M = np.zeros((out_size, in_size), dtype=np.float64)
    M[np.arange(out_size), lo] += 1.0 - frac
    M[np.arange(out_size), hi] += frac
    return M


def _gauss1d(ksize=7, sigma=1.0):
    k = np.arange(ksize, dtype=np.float64)
    mean = (ksize - 1) / 2.0
    g = np.exp(-(((k - mean) / sigma) ** 2) / 2.0)
    return g / g.sum()


def _blur_matrix(size, ksize=7, sigma=1.0):
    g = _gauss1d(ksize, sigma)
    half = ksize // 2
    M = np.zeros((size, size), dtype=np.float64)
    for i in range(size):
        for t in range(ksize):
            j = i + t - half
            if 0 <= j < size:
                M[i, j] += g[t]
    return M


def _tap_masks(H, W):
    """(9, H*W) 0/1 masks marking where a 3x3 tap reads inside the (zero-padded) image."""
    hh, ww = np.meshgrid(np.arange(H), np.arange(W), indexing='ij')
    m = np.zeros((9, H * W), np.float32)
    for t in range(9):
        dy, dx = t // 3 - 1, t % 3 - 1
        valid = (hh + dy >= 0) & (hh + dy < H) & (ww + dx >= 0) & (ww + dx < W)
        m[t] = valid.reshape(-1).astype(np.float32)
    return m


def _conv_weight_matrix(w_oihw, cin_pad):
    """PyTorch OIHW -> (Cout, 9*cin_pad) bf16, K index = (ky*3+kx)*cin_pad + ci."""
    o, cin = w_oihw.shape[0], w_oihw.shape[1]
    w = jnp.transpose(w_oihw, (0, 2, 3, 1))                  # (O, 3, 3, Cin)
    if cin_pad > cin:
        w = jnp.pad(w, ((0, 0), (0, 0), (0, 0), (0, cin_pad - cin)))
    return w.reshape(o, 9 * cin_pad).astype(jnp.bfloat16)


def _gate_matrices(att_w, att_b, Bblk):
    """Block-diagonal attention matrices so all Bblk images share one matmul.

    Row order of the output logits: [bg | fg | mix], each block in (image, channel) order —
    exactly matching the (Bblk*C, HW) row layout of x."""
    C = att_w.shape[1]
    eye = jnp.eye(Bblk, dtype=jnp.float32)
    blocks = []
    for g in range(3):                                        # [background, foreground, mix]
        wmx = jnp.kron(eye, att_w[g, :, :C].astype(jnp.float32))
        wav = jnp.kron(eye, att_w[g, :, C:].astype(jnp.float32))
        blocks.append(jnp.concatenate([wmx, wav], axis=1))
    W = jnp.concatenate(blocks, axis=0)                       # (3*Bblk*C, 2*Bblk*C)
    b = jnp.concatenate(
        [jnp.tile(att_b[g].astype(jnp.float32), Bblk) for g in range(3)]).reshape(-1, 1)
    return W, b


def init_params(key, C, mid):
    ks = jax.random.split(key, 12)

    def rnd(k, shape, s=0.2):
        return (s * jax.random.normal(k, shape)).astype(jnp.float32)

    return dict(
        att_w=rnd(ks[0], (3, C, 2 * C), 0.4),      # gate order: [background, foreground, mix]
        att_b=rnd(ks[1], (3, C), 0.1),
        conv1_w=rnd(ks[2], (mid, C, 3, 3), 0.15),  # PyTorch OIHW
        conv2_w=rnd(ks[3], (C, mid, 3, 3), 0.15),
        bn1_gamma=1.0 + rnd(ks[4], (mid,), 0.1),
        bn1_beta=rnd(ks[5], (mid,), 0.1),
        bn1_mean=rnd(ks[6], (mid,), 0.1),
        bn1_var=1.0 + jnp.abs(rnd(ks[7], (mid,), 0.2)),
        bn2_gamma=1.0 + rnd(ks[8], (C,), 0.1),
        bn2_beta=rnd(ks[9], (C,), 0.1),
        bn2_mean=rnd(ks[10], (C,), 0.1),
        bn2_var=1.0 + jnp.abs(rnd(ks[11], (C,), 0.2)),
    )


# ------------------------------ module wrapper ------------------------------

@functools.partial(jax.jit, static_argnames=("batch_block",))
def spatial_separated_attention(x_nchw, mask_nchw, params, batch_block=None):
    B, C, H, W = x_nchw.shape
    Hm, Wm = mask_nchw.shape[2], mask_nchw.shape[3]
    mid = params['conv1_w'].shape[0]
    HW = H * W

    Bblk = B if batch_block is None else batch_block
    assert B % Bblk == 0
    # Multi-step grids need sublane-aligned row blocks; single-step (default) covers v5e/v6e.
    # On v7x use batch_block=B//2 (with the alignment below) so the batch axis is sharded
    # across the two TensorCores ("parallel" / pltpu.CORE_PARALLEL).
    assert Bblk == B or ((Bblk * C) % 8 == 0 and Bblk % 8 == 0)
    nblk = B // Bblk
    Cpad = ((C + 7) // 8) * 8
    Mpad = ((mid + 7) // 8) * 8

    # x keeps the caller dtype; the kernel casts to f32 (review: halve I/O for bf16 callers).
    x_rows = x_nchw.reshape(B * C, HW)

    # mask path: bilinear resize (align_corners=True) + 7x7 gaussian blur as two tiny
    # SEPARABLE matmuls in XLA (review: no O((HW)^2) kron operator DMA'd into VMEM).
    A = jnp.asarray(_blur_matrix(H) @ _resize_matrix_align_corners(H, Hm), jnp.float32)
    Bw = jnp.asarray(_blur_matrix(W) @ _resize_matrix_align_corners(W, Wm), jnp.float32)
    m_blur = jnp.einsum('hp,bpq,wq->bhw', A, mask_nchw[:, 0].astype(jnp.float32),
                        Bw).reshape(B, HW)

    # constants (numpy work happens once, at trace time, because the wrapper is jitted)
    tap_masks = jnp.asarray(np.tile(_tap_masks(H, W), (1, Bblk)))          # (9, Bblk*HW)
    w1 = _conv_weight_matrix(params['conv1_w'], Cpad)                      # (mid, 9*Cpad) bf16
    w2 = _conv_weight_matrix(params['conv2_w'], Mpad)                      # (C, 9*Mpad)  bf16
    attw_big, attb_big = _gate_matrices(params['att_w'], params['att_b'], Bblk)

    eps = 1e-5
    s1v = params['bn1_gamma'] / jnp.sqrt(params['bn1_var'] + eps)
    sh1v = params['bn1_beta'] - params['bn1_mean'] * s1v
    s2v = params['bn2_gamma'] / jnp.sqrt(params['bn2_var'] + eps)
    sh2v = params['bn2_beta'] - params['bn2_mean'] * s2v
    s1, sh1 = s1v.reshape(mid, 1), sh1v.reshape(mid, 1)
    s2, sh2 = s2v.reshape(C, 1), sh2v.reshape(C, 1)

    kern = functools.partial(_ssa_fused_kernel, C=C, Cpad=Cpad, Mpad=Mpad,
                             H=H, W=W, Bblk=Bblk)

    def const_spec(shape):
        # constants: same block for every grid step -> fetched once, kept resident
        return pl.BlockSpec(shape, lambda i: (0, 0))

    flops = int(2 * B * HW * (mid * 9 * Cpad + C * 9 * Mpad) + 12 * B * C * HW)
    transcend = int(B * HW * (mid + C) + 3 * B * C)
    bytes_acc = int(2 * B * C * HW * x_nchw.dtype.itemsize + B * HW * 4
                    + 2 * (mid * 9 * Cpad + C * 9 * Mpad)
                    + 4 * (3 * Bblk * C) * (2 * Bblk * C) + 4 * 9 * Bblk * HW)

    out_rows = pl.pallas_call(
        kern,
        out_shape=jax.ShapeDtypeStruct((B * C, HW), x_nchw.dtype),
        grid=(nblk,),
        in_specs=[
            pl.BlockSpec((Bblk * C, HW), lambda i: (i, 0)),                # x (lane dim = HW)
            pl.BlockSpec((Bblk, HW), lambda i: (i, 0)),                    # blurred mask rows
            const_spec((3 * Bblk * C, 2 * Bblk * C)),                      # block-diag att W
            const_spec((3 * Bblk * C, 1)),                                 # att bias
            const_spec((mid, 9 * Cpad)),                                   # conv1 (bf16)
            const_spec((mid, 1)),                                          # bn1 scale
            const_spec((mid, 1)),                                          # bn1 shift
            const_spec((C, 9 * Mpad)),                                     # conv2 (bf16)
            const_spec((C, 1)),                                            # bn2 scale
            const_spec((C, 1)),                                            # bn2 shift
            const_spec((9, Bblk * HW)),                                    # tap validity masks
        ],
        out_specs=pl.BlockSpec((Bblk * C, HW), lambda i: (i, 0)),
        compiler_params=pltpu.CompilerParams(
            dimension_semantics=("parallel",) if nblk > 1 else ("arbitrary",)),
        cost_estimate=pl.CostEstimate(flops=flops, transcendentals=transcend,
                                      bytes_accessed=bytes_acc),
    )(x_rows, m_blur, attw_big, attb_big, w1, s1, sh1, w2, s2, sh2, tap_masks)

    return out_rows.reshape(B, C, H, W)


# ------------------------- pure-JAX reference (NCHW) -------------------------

def reference(x, mask, params):
    B, C, H, W = x.shape
    Hm, Wm = mask.shape[2], mask.shape[3]
    eps = 1e-5
    Rh = jnp.asarray(_resize_matrix_align_corners(H, Hm), jnp.float32)
    Rw = jnp.asarray(_resize_matrix_align_corners(W, Wm), jnp.float32)
    m = jnp.einsum('hi,bij,wj->bhw', Rh, mask[:, 0], Rw)
    g1 = jnp.asarray(_gauss1d(7, 1.0), jnp.float32)
    k2d = jnp.outer(g1, g1)[None, None]
    m = lax.conv_general_dilated(m[:, None], k2d, (1, 1), ((3, 3), (3, 3)),
                                 dimension_numbers=('NCHW', 'OIHW', 'NCHW'))

    pooled = jnp.concatenate([jnp.max(x, axis=(2, 3)), jnp.mean(x, axis=(2, 3))], axis=1)

    def gate(i):
        return jax.nn.sigmoid(pooled @ params['att_w'][i].T + params['att_b'][i])[:, :, None, None]

    background = gate(0) * x
    fgx = gate(1) * x
    mix = gate(2) * x

    def conv_bn_elu(h, w, gmm, bet, mean, var):
        y = lax.conv_general_dilated(h, w, (1, 1), ((1, 1), (1, 1)),
                                     dimension_numbers=('NCHW', 'OIHW', 'NCHW'))
        y = (y - mean[None, :, None, None]) / jnp.sqrt(var + eps)[None, :, None, None]
        y = y * gmm[None, :, None, None] + bet[None, :, None, None]
        return jax.nn.elu(y)

    fg = conv_bn_elu(fgx, params['conv1_w'], params['bn1_gamma'], params['bn1_beta'],
                     params['bn1_mean'], params['bn1_var'])
    fg = conv_bn_elu(fg, params['conv2_w'], params['bn2_gamma'], params['bn2_beta'],
                     params['bn2_mean'], params['bn2_var'])
    return m * (fg + mix) + (1.0 - m) * background


# ------------------------------------ main ------------------------------------

if __name__ == "__main__":
    key = jax.random.PRNGKey(0)
    kx, km, kp = jax.random.split(key, 3)

    B, C, H, W = 2, 4, 16, 16
    Hm, Wm = 8, 8
    mid = int(2.0 * C)

    x = jax.random.normal(kx, (B, C, H, W), jnp.float32)
    mask = jax.random.uniform(km, (B, 1, Hm, Wm), jnp.float32)
    params = init_params(kp, C, mid)

    out = spatial_separated_attention(x, mask, params)
    out = jax.block_until_ready(out)

    ref = reference(x, mask, params)
    # bf16 MXU operands in the kernel vs. a default-precision f32 XLA reference across two
    # chained K<=72 convolutions: compare at a few e-2 (output std ~0.7, so still a tight check).
    np.testing.assert_allclose(np.asarray(out), np.asarray(ref), rtol=3e-2, atol=3e-2)
    print("KERNEL_OK")
</pallas_src>

<mosaic_0001>
module attributes {stable_mosaic.version = 11 : i64} {
  func.func @_ssa_fused_kernel(%arg0: i32, %arg1: memref<8x256xf32, #tpu.memory_space<vmem>>, %arg2: memref<2x256xf32, #tpu.memory_space<vmem>>, %arg3: memref<24x16xf32, #tpu.memory_space<vmem>>, %arg4: memref<24x1xf32, #tpu.memory_space<vmem>>, %arg5: memref<8x72xbf16, #tpu.memory_space<vmem>>, %arg6: memref<8x1xf32, #tpu.memory_space<vmem>>, %arg7: memref<8x1xf32, #tpu.memory_space<vmem>>, %arg8: memref<4x72xbf16, #tpu.memory_space<vmem>>, %arg9: memref<4x1xf32, #tpu.memory_space<vmem>>, %arg10: memref<4x1xf32, #tpu.memory_space<vmem>>, %arg11: memref<9x512xf32, #tpu.memory_space<vmem>>, %arg12: memref<8x256xf32, #tpu.memory_space<vmem>>) attributes {dimension_semantics = [#tpu.dimension_semantics<arbitrary>], iteration_bounds = array<i64: 1>, scalar_prefetch = 0 : i64, scratch_operands = 0 : i64, tpu.core_type = #tpu.core_type<tc>, window_params = [{transform_indices = @transform_0, window_bounds = array<i64: 8, 256>}, {transform_indices = @transform_1, window_bounds = array<i64: 2, 256>}, {pipeline_mode = #tpu.pipeline_mode<synchronous>, transform_indices = @transform_2, window_bounds = array<i64: 24, 16>}, {pipeline_mode = #tpu.pipeline_mode<synchronous>, transform_indices = @transform_3, window_bounds = array<i64: 24, 1>}, {pipeline_mode = #tpu.pipeline_mode<synchronous>, transform_indices = @transform_4, window_bounds = array<i64: 8, 72>}, {pipeline_mode = #tpu.pipeline_mode<synchronous>, transform_indices = @transform_5, window_bounds = array<i64: 8, 1>}, {pipeline_mode = #tpu.pipeline_mode<synchronous>, transform_indices = @transform_6, window_bounds = array<i64: 8, 1>}, {pipeline_mode = #tpu.pipeline_mode<synchronous>, transform_indices = @transform_7, window_bounds = array<i64: 4, 72>}, {pipeline_mode = #tpu.pipeline_mode<synchronous>, transform_indices = @transform_8, window_bounds = array<i64: 4, 1>}, {pipeline_mode = #tpu.pipeline_mode<synchronous>, transform_indices = @transform_9, window_bounds = array<i64: 4, 1>}, {pipeline_mode = #tpu.pipeline_mode<synchronous>, transform_indices = @transform_10, window_bounds = array<i64: 9, 512>}, {transform_indices = @transform_11, window_bounds = array<i64: 8, 256>}]} {
    %c0 = arith.constant 0 : index
    %c0_0 = arith.constant 0 : index
    %0 = vector.load %arg1[%c0, %c0_0] : memref<8x256xf32, #tpu.memory_space<vmem>>, vector<8x256xf32>
    %c0_1 = arith.constant 0 : index
    %c0_2 = arith.constant 0 : index
    %1 = vector.load %arg11[%c0_1, %c0_2] : memref<9x512xf32, #tpu.memory_space<vmem>>, vector<9x512xf32>
    %cst = arith.constant dense<0xFF800000> : vector<8xf32>
    %2 = vector.multi_reduction <maximumf>, %0, %cst [1] : vector<8x256xf32> to vector<8xf32>
    %3 = vector.shape_cast %2 : vector<8xf32> to vector<8x1xf32>
    %cst_3 = arith.constant dense<0.000000e+00> : vector<8xf32>
    %4 = vector.multi_reduction <add>, %0, %cst_3 [1] : vector<8x256xf32> to vector<8xf32>
    %5 = vector.shape_cast %4 : vector<8xf32> to vector<8x1xf32>
    %cst_4 = arith.constant 2.560000e+02 : f32
    %6 = vector.broadcast %cst_4 : f32 to vector<8x1xf32>
    %7 = arith.divf %5, %6 : vector<8x1xf32>
    %8 = tpu.concatenate %3, %7 in 0 : vector<8x1xf32>, vector<8x1xf32> -> vector<16x1xf32>
    %9 = vector.shape_cast %8 : vector<16x1xf32> to vector<16x1xf32>
    %10 = vector.broadcast %9 : vector<16x1xf32> to vector<16x128xf32>
    %c0_5 = arith.constant 0 : index
    %c0_6 = arith.constant 0 : index
    %11 = vector.load %arg3[%c0_5, %c0_6] : memref<24x16xf32, #tpu.memory_space<vmem>>, vector<24x16xf32>
    %cst_7 = arith.constant dense<0.000000e+00> : vector<24x128xf32>
    %12 = tpu.matmul %11, %10, %cst_7 {dimension_numbers = #tpu.dot_dimension_numbers<[1], [0], [0], [1], [0, 0, 1, 1], [], []>} : vector<24x16xf32>, vector<16x128xf32>, vector<24x128xf32> -> vector<24x128xf32>
    %13 = vector.extract_strided_slice %12 {offsets = [0, 0], sizes = [24, 1], strides = [1, 1]} : vector<24x128xf32> to vector<24x1xf32>
    %c0_8 = arith.constant 0 : index
    %c0_9 = arith.constant 0 : index
    %14 = vector.load %arg4[%c0_8, %c0_9] : memref<24x1xf32, #tpu.memory_space<vmem>>, vector<24x1xf32>
    %15 = arith.addf %13, %14 : vector<24x1xf32>
    %16 = arith.negf %15 : vector<24x1xf32>
    %17 = math.exp %16 : vector<24x1xf32>
    %cst_10 = arith.constant 1.000000e+00 : f32
    %18 = vector.broadcast %cst_10 : f32 to vector<24x1xf32>
    %19 = arith.addf %18, %17 : vector<24x1xf32>
    %20 = arith.divf %18, %19 : vector<24x1xf32>
    %21 = vector.extract_strided_slice %20 {offsets = [0, 0], sizes = [8, 1], strides = [1, 1]} : vector<24x1xf32> to vector<8x1xf32>
    %22 = vector.extract_strided_slice %20 {offsets = [8, 0], sizes = [8, 1], strides = [1, 1]} : vector<24x1xf32> to vector<8x1xf32>
    %23 = vector.extract_strided_slice %20 {offsets = [16, 0], sizes = [8, 1], strides = [1, 1]} : vector<24x1xf32> to vector<8x1xf32>
    %24 = vector.broadcast %22 : vector<8x1xf32> to vector<8x256xf32>
    %25 = arith.mulf %24, %0 : vector<8x256xf32>
    %26 = vector.extract_strided_slice %25 {offsets = [0, 0], sizes = [4, 256], strides = [1, 1]} : vector<8x256xf32> to vector<4x256xf32>
    %27 = vector.extract_strided_slice %25 {offsets = [4, 0], sizes = [4, 256], strides = [1, 1]} : vector<8x256xf32> to vector<4x256xf32>
    %28 = tpu.concatenate %26, %27 in 1 : vector<4x256xf32>, vector<4x256xf32> -> vector<4x512xf32>
    %cst_11 = arith.constant 0.000000e+00 : f32
    %29 = vector.broadcast %cst_11 : f32 to vector<4x512xf32>
    %30 = tpu.concatenate %28, %29 in 0 : vector<4x512xf32>, vector<4x512xf32> -> vector<8x512xf32>
    %c0_12 = arith.constant 0 : index
    %c0_13 = arith.constant 0 : index
    %31 = vector.load %arg5[%c0_12, %c0_13] : memref<8x72xbf16, #tpu.memory_space<vmem>>, vector<8x72xbf16>
    %32 = vector.extract_strided_slice %30 {offsets = [0, 495], sizes = [8, 17], strides = [1, 1]} : vector<8x512xf32> to vector<8x17xf32>
    %33 = vector.extract_strided_slice %30 {offsets = [0, 0], sizes = [8, 495], strides = [1, 1]} : vector<8x512xf32> to vector<8x495xf32>
    %34 = tpu.concatenate %32, %33 in 1 : vector<8x17xf32>, vector<8x495xf32> -> vector<8x512xf32>
    %35 = vector.extract_strided_slice %1 {offsets = [0, 0], sizes = [1, 512], strides = [1, 1]} : vector<9x512xf32> to vector<1x512xf32>
    %36 = vector.broadcast %35 : vector<1x512xf32> to vector<8x512xf32>
    %37 = arith.mulf %34, %36 : vector<8x512xf32>
    %38 = arith.truncf %37 : vector<8x512xf32> to vector<8x512xbf16>
    %39 = vector.extract_strided_slice %30 {offsets = [0, 496], sizes = [8, 16], strides = [1, 1]} : vector<8x512xf32> to vector<8x16xf32>
    %40 = vector.extract_strided_slice %30 {offsets = [0, 0], sizes = [8, 496], strides = [1, 1]} : vector<8x512xf32> to vector<8x496xf32>
    %41 = tpu.concatenate %39, %40 in 1 : vector<8x16xf32>, vector<8x496xf32> -> vector<8x512xf32>
    %42 = vector.extract_strided_slice %1 {offsets = [1, 0], sizes = [1, 512], strides = [1, 1]} : vector<9x512xf32> to vector<1x512xf32>
    %43 = vector.broadcast %42 : vector<1x512xf32> to vector<8x512xf32>
    %44 = arith.mulf %41, %43 : vector<8x512xf32>
    %45 = arith.truncf %44 : vector<8x512xf32> to vector<8x512xbf16>
    %46 = vector.extract_strided_slice %30 {offsets = [0, 497], sizes = [8, 15], strides = [1, 1]} : vector<8x512xf32> to vector<8x15xf32>
    %47 = vector.extract_strided_slice %30 {offsets = [0, 0], sizes = [8, 497], strides = [1, 1]} : vector<8x512xf32> to vector<8x497xf32>
    %48 = tpu.concatenate %46, %47 in 1 : vector<8x15xf32>, vector<8x497xf32> -> vector<8x512xf32>
    %49 = vector.extract_strided_slice %1 {offsets = [2, 0], sizes = [1, 512], strides = [1, 1]} : vector<9x512xf32> to vector<1x512xf32>
    %50 = vector.broadcast %49 : vector<1x512xf32> to vector<8x512xf32>
    %51 = arith.mulf %48, %50 : vector<8x512xf32>
    %52 = arith.truncf %51 : vector<8x512xf32> to vector<8x512xbf16>
    %53 = vector.extract_strided_slice %30 {offsets = [0, 511], sizes = [8, 1], strides = [1, 1]} : vector<8x512xf32> to vector<8x1xf32>
    %54 = vector.extract_strided_slice %30 {offsets = [0, 0], sizes = [8, 511], strides = [1, 1]} : vector<8x512xf32> to vector<8x511xf32>
    %55 = tpu.concatenate %53, %54 in 1 : vector<8x1xf32>, vector<8x511xf32> -> vector<8x512xf32>
    %56 = vector.extract_strided_slice %1 {offsets = [3, 0], sizes = [1, 512], strides = [1, 1]} : vector<9x512xf32> to vector<1x512xf32>
    %57 = vector.broadcast %56 : vector<1x512xf32> to vector<8x512xf32>
    %58 = arith.mulf %55, %57 : vector<8x512xf32>
    %59 = arith.truncf %58 : vector<8x512xf32> to vector<8x512xbf16>
    %60 = arith.truncf %30 : vector<8x512xf32> to vector<8x512xbf16>
    %61 = vector.extract_strided_slice %30 {offsets = [0, 1], sizes = [8, 511], strides = [1, 1]} : vector<8x512xf32> to vector<8x511xf32>
    %62 = vector.extract_strided_slice %30 {offsets = [0, 0], sizes = [8, 1], strides = [1, 1]} : vector<8x512xf32> to vector<8x1xf32>
    %63 = tpu.concatenate %61, %62 in 1 : vector<8x511xf32>, vector<8x1xf32> -> vector<8x512xf32>
    %64 = vector.extract_strided_slice %1 {offsets = [5, 0], sizes = [1, 512], strides = [1, 1]} : vector<9x512xf32> to vector<1x512xf32>
    %65 = vector.broadcast %64 : vector<1x512xf32> to vector<8x512xf32>
    %66 = arith.mulf %63, %65 : vector<8x512xf32>
    %67 = arith.truncf %66 : vector<8x512xf32> to vector<8x512xbf16>
    %68 = vector.extract_strided_slice %30 {offsets = [0, 15], sizes = [8, 497], strides = [1, 1]} : vector<8x512xf32> to vector<8x497xf32>
    %69 = vector.extract_strided_slice %30 {offsets = [0, 0], sizes = [8, 15], strides = [1, 1]} : vector<8x512xf32> to vector<8x15xf32>
    %70 = tpu.concatenate %68, %69 in 1 : vector<8x497xf32>, vector<8x15xf32> -> vector<8x512xf32>
    %71 = vector.extract_strided_slice %1 {offsets = [6, 0], sizes = [1, 512], strides = [1, 1]} : vector<9x512xf32> to vector<1x512xf32>
    %72 = vector.broadcast %71 : vector<1x512xf32> to vector<8x512xf32>
    %73 = arith.mulf %70, %72 : vector<8x512xf32>
    %74 = arith.truncf %73 : vector<8x512xf32> to vector<8x512xbf16>
    %75 = vector.extract_strided_slice %30 {offsets = [0, 16], sizes = [8, 496], strides = [1, 1]} : vector<8x512xf32> to vector<8x496xf32>
    %76 = vector.extract_strided_slice %30 {offsets = [0, 0], sizes = [8, 16], strides = [1, 1]} : vector<8x512xf32> to vector<8x16xf32>
    %77 = tpu.concatenate %75, %76 in 1 : vector<8x496xf32>, vector<8x16xf32> -> vector<8x512xf32>
    %78 = vector.extract_strided_slice %1 {offsets = [7, 0], sizes = [1, 512], strides = [1, 1]} : vector<9x512xf32> to vector<1x512xf32>
    %79 = vector.broadcast %78 : vector<1x512xf32> to vector<8x512xf32>
    %80 = arith.mulf %77, %79 : vector<8x512xf32>
    %81 = arith.truncf %80 : vector<8x512xf32> to vector<8x512xbf16>
    %82 = vector.extract_strided_slice %30 {offsets = [0, 17], sizes = [8, 495], strides = [1, 1]} : vector<8x512xf32> to vector<8x495xf32>
    %83 = vector.extract_strided_slice %30 {offsets = [0, 0], sizes = [8, 17], strides = [1, 1]} : vector<8x512xf32> to vector<8x17xf32>
    %84 = tpu.concatenate %82, %83 in 1 : vector<8x495xf32>, vector<8x17xf32> -> vector<8x512xf32>
    %85 = vector.extract_strided_slice %1 {offsets = [8, 0], sizes = [1, 512], strides = [1, 1]} : vector<9x512xf32> to vector<1x512xf32>
    %86 = vector.broadcast %85 : vector<1x512xf32> to vector<8x512xf32>
    %87 = arith.mulf %84, %86 : vector<8x512xf32>
    %88 = arith.truncf %87 : vector<8x512xf32> to vector<8x512xbf16>
    %89 = tpu.concatenate %38, %45, %52, %59, %60, %67, %74, %81, %88 in 0 : vector<8x512xbf16>, vector<8x512xbf16>, vector<8x512xbf16>, vector<8x512xbf16>, vector<8x512xbf16>, vector<8x512xbf16>, vector<8x512xbf16>, vector<8x512xbf16>, vector<8x512xbf16> -> vector<72x512xbf16>
    %cst_14 = arith.constant dense<0.000000e+00> : vector<8x512xf32>
    %90 = tpu.matmul %31, %89, %cst_14 {dimension_numbers = #tpu.dot_dimension_numbers<[1], [0], [0], [1], [0, 0, 1, 1], [], []>} : vector<8x72xbf16>, vector<72x512xbf16>, vector<8x512xf32> -> vector<8x512xf32>
    %c0_15 = arith.constant 0 : index
    %c0_16 = arith.constant 0 : index
    %91 = vector.load %arg6[%c0_15, %c0_16] : memref<8x1xf32, #tpu.memory_space<vmem>>, vector<8x1xf32>
    %c0_17 = arith.constant 0 : index
    %c0_18 = arith.constant 0 : index
    %92 = vector.load %arg7[%c0_17, %c0_18] : memref<8x1xf32, #tpu.memory_space<vmem>>, vector<8x1xf32>
    %93 = vector.broadcast %91 : vector<8x1xf32> to vector<8x512xf32>
    %94 = arith.mulf %90, %93 : vector<8x512xf32>
    %95 = vector.broadcast %92 : vector<8x1xf32> to vector<8x512xf32>
    %96 = arith.addf %94, %95 : vector<8x512xf32>
    %cst_19 = arith.constant 0.000000e+00 : f32
    %97 = vector.broadcast %cst_19 : f32 to vector<8x512xf32>
    %98 = arith.cmpf ogt, %96, %97 : vector<8x512xf32>
    %cst_20 = arith.constant 0.000000e+00 : f32
    %99 = vector.broadcast %cst_20 : f32 to vector<8x512xf32>
    %100 = arith.minimumf %96, %99 : vector<8x512xf32>
    %101 = math.exp %100 : vector<8x512xf32>
    %cst_21 = arith.constant 1.000000e+00 : f32
    %102 = vector.broadcast %cst_21 : f32 to vector<8x512xf32>
    %103 = arith.subf %101, %102 : vector<8x512xf32>
    %104 = arith.select %98, %96, %103 : vector<8x512xi1>, vector<8x512xf32>
    %c0_22 = arith.constant 0 : index
    %c0_23 = arith.constant 0 : index
    %105 = vector.load %arg8[%c0_22, %c0_23] : memref<4x72xbf16, #tpu.memory_space<vmem>>, vector<4x72xbf16>
    %106 = vector.extract_strided_slice %104 {offsets = [0, 495], sizes = [8, 17], strides = [1, 1]} : vector<8x512xf32> to vector<8x17xf32>
    %107 = vector.extract_strided_slice %104 {offsets = [0, 0], sizes = [8, 495], strides = [1, 1]} : vector<8x512xf32> to vector<8x495xf32>
    %108 = tpu.concatenate %106, %107 in 1 : vector<8x17xf32>, vector<8x495xf32> -> vector<8x512xf32>
    %109 = vector.extract_strided_slice %1 {offsets = [0, 0], sizes = [1, 512], strides = [1, 1]} : vector<9x512xf32> to vector<1x512xf32>
    %110 = vector.broadcast %109 : vector<1x512xf32> to vector<8x512xf32>
    %111 = arith.mulf %108, %110 : vector<8x512xf32>
    %112 = arith.truncf %111 : vector<8x512xf32> to vector<8x512xbf16>
    %113 = vector.extract_strided_slice %104 {offsets = [0, 496], sizes = [8, 16], strides = [1, 1]} : vector<8x512xf32> to vector<8x16xf32>
    %114 = vector.extract_strided_slice %104 {offsets = [0, 0], sizes = [8, 496], strides = [1, 1]} : vector<8x512xf32> to vector<8x496xf32>
    %115 = tpu.concatenate %113, %114 in 1 : vector<8x16xf32>, vector<8x496xf32> -> vector<8x512xf32>
    %116 = vector.extract_strided_slice %1 {offsets = [1, 0], sizes = [1, 512], strides = [1, 1]} : vector<9x512xf32> to vector<1x512xf32>
    %117 = vector.broadcast %116 : vector<1x512xf32> to vector<8x512xf32>
    %118 = arith.mulf %115, %117 : vector<8x512xf32>
    %119 = arith.truncf %118 : vector<8x512xf32> to vector<8x512xbf16>
    %120 = vector.extract_strided_slice %104 {offsets = [0, 497], sizes = [8, 15], strides = [1, 1]} : vector<8x512xf32> to vector<8x15xf32>
    %121 = vector.extract_strided_slice %104 {offsets = [0, 0], sizes = [8, 497], strides = [1, 1]} : vector<8x512xf32> to vector<8x497xf32>
    %122 = tpu.concatenate %120, %121 in 1 : vector<8x15xf32>, vector<8x497xf32> -> vector<8x512xf32>
    %123 = vector.extract_strided_slice %1 {offsets = [2, 0], sizes = [1, 512], strides = [1, 1]} : vector<9x512xf32> to vector<1x512xf32>
    %124 = vector.broadcast %123 : vector<1x512xf32> to vector<8x512xf32>
    %125 = arith.mulf %122, %124 : vector<8x512xf32>
    %126 = arith.truncf %125 : vector<8x512xf32> to vector<8x512xbf16>
    %127 = vector.extract_strided_slice %104 {offsets = [0, 511], sizes = [8, 1], strides = [1, 1]} : vector<8x512xf32> to vector<8x1xf32>
    %128 = vector.extract_strided_slice %104 {offsets = [0, 0], sizes = [8, 511], strides = [1, 1]} : vector<8x512xf32> to vector<8x511xf32>
    %129 = tpu.concatenate %127, %128 in 1 : vector<8x1xf32>, vector<8x511xf32> -> vector<8x512xf32>
    %130 = vector.extract_strided_slice %1 {offsets = [3, 0], sizes = [1, 512], strides = [1, 1]} : vector<9x512xf32> to vector<1x512xf32>
    %131 = vector.broadcast %130 : vector<1x512xf32> to vector<8x512xf32>
    %132 = arith.mulf %129, %131 : vector<8x512xf32>
    %133 = arith.truncf %132 : vector<8x512xf32> to vector<8x512xbf16>
    %134 = arith.truncf %104 : vector<8x512xf32> to vector<8x512xbf16>
    %135 = vector.extract_strided_slice %104 {offsets = [0, 1], sizes = [8, 511], strides = [1, 1]} : vector<8x512xf32> to vector<8x511xf32>
    %136 = vector.extract_strided_slice %104 {offsets = [0, 0], sizes = [8, 1], strides = [1, 1]} : vector<8x512xf32> to vector<8x1xf32>
    %137 = tpu.concatenate %135, %136 in 1 : vector<8x511xf32>, vector<8x1xf32> -> vector<8x512xf32>
    %138 = vector.extract_strided_slice %1 {offsets = [5, 0], sizes = [1, 512], strides = [1, 1]} : vector<9x512xf32> to vector<1x512xf32>
    %139 = vector.broadcast %138 : vector<1x512xf32> to vector<8x512xf32>
    %140 = arith.mulf %137, %139 : vector<8x512xf32>
    %141 = arith.truncf %140 : vector<8x512xf32> to vector<8x512xbf16>
    %142 = vector.extract_strided_slice %104 {offsets = [0, 15], sizes = [8, 497], strides = [1, 1]} : vector<8x512xf32> to vector<8x497xf32>
    %143 = vector.extract_strided_slice %104 {offsets = [0, 0], sizes = [8, 15], strides = [1, 1]} : vector<8x512xf32> to vector<8x15xf32>
    %144 = tpu.concatenate %142, %143 in 1 : vector<8x497xf32>, vector<8x15xf32> -> vector<8x512xf32>
    %145 = vector.extract_strided_slice %1 {offsets = [6, 0], sizes = [1, 512], strides = [1, 1]} : vector<9x512xf32> to vector<1x512xf32>
    %146 = vector.broadcast %145 : vector<1x512xf32> to vector<8x512xf32>
    %147 = arith.mulf %144, %146 : vector<8x512xf32>
    %148 = arith.truncf %147 : vector<8x512xf32> to vector<8x512xbf16>
    %149 = vector.extract_strided_slice %104 {offsets = [0, 16], sizes = [8, 496], strides = [1, 1]} : vector<8x512xf32> to vector<8x496xf32>
    %150 = vector.extract_strided_slice %104 {offsets = [0, 0], sizes = [8, 16], strides = [1, 1]} : vector<8x512xf32> to vector<8x16xf32>
    %151 = tpu.concatenate %149, %150 in 1 : vector<8x496xf32>, vector<8x16xf32> -> vector<8x512xf32>
    %152 = vector.extract_strided_slice %1 {offsets = [7, 0], sizes = [1, 512], strides = [1, 1]} : vector<9x512xf32> to vector<1x512xf32>
    %153 = vector.broadcast %152 : vector<1x512xf32> to vector<8x512xf32>
    %154 = arith.mulf %151, %153 : vector<8x512xf32>
    %155 = arith.truncf %154 : vector<8x512xf32> to vector<8x512xbf16>
    %156 = vector.extract_strided_slice %104 {offsets = [0, 17], sizes = [8, 495], strides = [1, 1]} : vector<8x512xf32> to vector<8x495xf32>
    %157 = vector.extract_strided_slice %104 {offsets = [0, 0], sizes = [8, 17], strides = [1, 1]} : vector<8x512xf32> to vector<8x17xf32>
    %158 = tpu.concatenate %156, %157 in 1 : vector<8x495xf32>, vector<8x17xf32> -> vector<8x512xf32>
    %159 = vector.extract_strided_slice %1 {offsets = [8, 0], sizes = [1, 512], strides = [1, 1]} : vector<9x512xf32> to vector<1x512xf32>
    %160 = vector.broadcast %159 : vector<1x512xf32> to vector<8x512xf32>
    %161 = arith.mulf %158, %160 : vector<8x512xf32>
    %162 = arith.truncf %161 : vector<8x512xf32> to vector<8x512xbf16>
    %163 = tpu.concatenate %112, %119, %126, %133, %134, %141, %148, %155, %162 in 0 : vector<8x512xbf16>, vector<8x512xbf16>, vector<8x512xbf16>, vector<8x512xbf16>, vector<8x512xbf16>, vector<8x512xbf16>, vector<8x512xbf16>, vector<8x512xbf16>, vector<8x512xbf16> -> vector<72x512xbf16>
    %cst_24 = arith.constant dense<0.000000e+00> : vector<4x512xf32>
    %164 = tpu.matmul %105, %163, %cst_24 {dimension_numbers = #tpu.dot_dimension_numbers<[1], [0], [0], [1], [0, 0, 1, 1], [], []>} : vector<4x72xbf16>, vector<72x512xbf16>, vector<4x512xf32> -> vector<4x512xf32>
    %c0_25 = arith.constant 0 : index
    %c0_26 = arith.constant 0 : index
    %165 = vector.load %arg9[%c0_25, %c0_26] : memref<4x1xf32, #tpu.memory_space<vmem>>, vector<4x1xf32>
    %c0_27 = arith.constant 0 : index
    %c0_28 = arith.constant 0 : index
    %166 = vector.load %arg10[%c0_27, %c0_28] : memref<4x1xf32, #tpu.memory_space<vmem>>, vector<4x1xf32>
    %167 = vector.broadcast %165 : vector<4x1xf32> to vector<4x512xf32>
    %168 = arith.mulf %164, %167 : vector<4x512xf32>
    %169 = vector.broadcast %166 : vector<4x1xf32> to vector<4x512xf32>
    %170 = arith.addf %168, %169 : vector<4x512xf32>
    %cst_29 = arith.constant 0.000000e+00 : f32
    %171 = vector.broadcast %cst_29 : f32 to vector<4x512xf32>
    %172 = arith.cmpf ogt, %170, %171 : vector<4x512xf32>
    %cst_30 = arith.constant 0.000000e+00 : f32
    %173 = vector.broadcast %cst_30 : f32 to vector<4x512xf32>
    %174 = arith.minimumf %170, %173 : vector<4x512xf32>
    %175 = math.exp %174 : vector<4x512xf32>
    %cst_31 = arith.constant 1.000000e+00 : f32
    %176 = vector.broadcast %cst_31 : f32 to vector<4x512xf32>
    %177 = arith.subf %175, %176 : vector<4x512xf32>
    %178 = arith.select %172, %170, %177 : vector<4x512xi1>, vector<4x512xf32>
    %179 = vector.extract_strided_slice %178 {offsets = [0, 0], sizes = [4, 256], strides = [1, 1]} : vector<4x512xf32> to vector<4x256xf32>
    %180 = vector.extract_strided_slice %178 {offsets = [0, 256], sizes = [4, 256], strides = [1, 1]} : vector<4x512xf32> to vector<4x256xf32>
    %181 = tpu.concatenate %179, %180 in 0 : vector<4x256xf32>, vector<4x256xf32> -> vector<8x256xf32>
    %c0_32 = arith.constant 0 : index
    %c0_33 = arith.constant 0 : index
    %182 = vector.load %arg2[%c0_32, %c0_33] : memref<2x256xf32, #tpu.memory_space<vmem>>, vector<2x256xf32>
    %183 = vector.extract_strided_slice %182 {offsets = [0, 0], sizes = [1, 256], strides = [1, 1]} : vector<2x256xf32> to vector<1x256xf32>
    %184 = vector.shape_cast %183 : vector<1x256xf32> to vector<1x256xf32>
    %185 = vector.broadcast %184 : vector<1x256xf32> to vector<4x256xf32>
    %186 = vector.extract_strided_slice %182 {offsets = [1, 0], sizes = [1, 256], strides = [1, 1]} : vector<2x256xf32> to vector<1x256xf32>
    %187 = vector.shape_cast %186 : vector<1x256xf32> to vector<1x256xf32>
    %188 = vector.broadcast %187 : vector<1x256xf32> to vector<4x256xf32>
    %189 = tpu.concatenate %185, %188 in 0 : vector<4x256xf32>, vector<4x256xf32> -> vector<8x256xf32>
    %190 = vector.broadcast %23 : vector<8x1xf32> to vector<8x256xf32>
    %191 = arith.mulf %190, %0 : vector<8x256xf32>
    %192 = arith.addf %181, %191 : vector<8x256xf32>
    %193 = arith.mulf %189, %192 : vector<8x256xf32>
    %cst_34 = arith.constant 1.000000e+00 : f32
    %194 = vector.broadcast %cst_34 : f32 to vector<8x256xf32>
    %195 = arith.subf %194, %189 : vector<8x256xf32>
    %196 = vector.broadcast %21 : vector<8x1xf32> to vector<8x256xf32>
    %197 = arith.mulf %196, %0 : vector<8x256xf32>
    %198 = arith.mulf %195, %197 : vector<8x256xf32>
    %199 = arith.addf %193, %198 : vector<8x256xf32>
    %c0_35 = arith.constant 0 : index
    %c0_36 = arith.constant 0 : index
    %200 = vector.load %arg12[%c0_35, %c0_36] : memref<8x256xf32, #tpu.memory_space<vmem>>, vector<8x256xf32>
    tpu.vector_store %arg12[%c0_35, %c0_36], %199 {strides = array<i32>} : memref<8x256xf32, #tpu.memory_space<vmem>>, vector<8x256xf32>,
    return
  }
  func.func @transform_0(%arg0: i32) -> (i32, i32) {
    %c0_i32 = arith.constant 0 : i32
    %c0_i32_0 = arith.constant 0 : i32
    return %arg0, %c0_i32 : i32, i32
  }
  func.func @transform_1(%arg0: i32) -> (i32, i32) {
    %c0_i32 = arith.constant 0 : i32
    %c0_i32_0 = arith.constant 0 : i32
    return %arg0, %c0_i32 : i32, i32
  }
  func.func @transform_2(%arg0: i32) -> (i32, i32) {
    %c0_i32 = arith.constant 0 : i32
    %c0_i32_0 = arith.constant 0 : i32
    %c0_i32_1 = arith.constant 0 : i32
    return %c0_i32, %c0_i32_0 : i32, i32
  }
  func.func @transform_3(%arg0: i32) -> (i32, i32) {
    %c0_i32 = arith.constant 0 : i32
    %c0_i32_0 = arith.constant 0 : i32
    %c0_i32_1 = arith.constant 0 : i32
    return %c0_i32, %c0_i32_0 : i32, i32
  }
  func.func @transform_4(%arg0: i32) -> (i32, i32) {
    %c0_i32 = arith.constant 0 : i32
    %c0_i32_0 = arith.constant 0 : i32
    %c0_i32_1 = arith.constant 0 : i32
    return %c0_i32, %c0_i32_0 : i32, i32
  }
  func.func @transform_5(%arg0: i32) -> (i32, i32) {
    %c0_i32 = arith.constant 0 : i32
    %c0_i32_0 = arith.constant 0 : i32
    %c0_i32_1 = arith.constant 0 : i32
    return %c0_i32, %c0_i32_0 : i32, i32
  }
  func.func @transform_6(%arg0: i32) -> (i32, i32) {
    %c0_i32 = arith.constant 0 : i32
    %c0_i32_0 = arith.constant 0 : i32
    %c0_i32_1 = arith.constant 0 : i32
    return %c0_i32, %c0_i32_0 : i32, i32
  }
  func.func @transform_7(%arg0: i32) -> (i32, i32) {
    %c0_i32 = arith.constant 0 : i32
    %c0_i32_0 = arith.constant 0 : i32
    %c0_i32_1 = arith.constant 0 : i32
    return %c0_i32, %c0_i32_0 : i32, i32
  }
  func.func @transform_8(%arg0: i32) -> (i32, i32) {
    %c0_i32 = arith.constant 0 : i32
    %c0_i32_0 = arith.constant 0 : i32
    %c0_i32_1 = arith.constant 0 : i32
    return %c0_i32, %c0_i32_0 : i32, i32
  }
  func.func @transform_9(%arg0: i32) -> (i32, i32) {
    %c0_i32 = arith.constant 0 : i32
    %c0_i32_0 = arith.constant 0 : i32
    %c0_i32_1 = arith.constant 0 : i32
    return %c0_i32, %c0_i32_0 : i32, i32
  }
  func.func @transform_10(%arg0: i32) -> (i32, i32) {
    %c0_i32 = arith.constant 0 : i32
    %c0_i32_0 = arith.constant 0 : i32
    %c0_i32_1 = arith.constant 0 : i32
    return %c0_i32, %c0_i32_0 : i32, i32
  }
  func.func @transform_11(%arg0: i32) -> (i32, i32) {
    %c0_i32 = arith.constant 0 : i32
    %c0_i32_0 = arith.constant 0 : i32
    return %arg0, %c0_i32 : i32, i32
  }
}

</mosaic_0001>

<llo_original>
// kernel: tile.14
$region0: #{tile.14}
  #allocation0 [shape = 's32[1]{0}', space=sflag, size = 0x4, scoped, tag = 'scoped memory for tile.14']
  %s0 = inlined_call_operand.vmem [shape: f32[4], index: 0, kind: input, shape index: {}]
  %s1 = inlined_call_operand.vmem [shape: f32[2,4], index: 1, kind: output, shape index: {}]
  // Predicated region
  $region2: #{tile.14} parent=0 // pred_check
    _
  $region3: #{tile.14} parent=0 // pred_check_branch
    %3 = sbr.rel (0) target = $region5
  $region4: #{tile.14} parent=0 // pred_region
    _
  $region5: #{tile.14} parent=0 // pred_fallthru
    _
  %v4 = vld [vmem:[%s0] ss:$0 sm:$0xff]
  %5 = vst [vmem:[%s1] sm:$0x3] %v4

// kernel: tile.15
$region0: #{tile.15}
  %s0 = inlined_call_operand.vmem [shape: f32[2,4], index: 0, kind: input, shape index: {}]
  %s1 = inlined_call_operand.vmem [shape: f32[8], index: 1, kind: output, shape index: {}]
  $region1: #{tile.15} parent=0
    #allocation0 [shape = 'u8[4096]{0}', space=vmem, size = 0x1000, scoped, tag = 'scoped mem for output reshape']
    #allocation1 [shape = 'u8[4096]{0}', space=vmem, size = 0x1000, scoped, tag = 'scoped mem for input reshape']
    %s3 = ssub.s32 4, 1
    %v4 = vld [vmem:[%s0] sm:%s3]
    %5 = vst [vmem:[#allocation1] sm:%s3] %v4
    %v6 = vld [vmem:[#allocation1] sm:$0x1]
    %vm7 = vcmask 31744
    %8 = vst.msk [vmem:[#allocation0] sm:$0x1] %vm7, %v6
    %s9 = scalar_lea.vmem [#allocation1], 1
    %v10 = vld [vmem:[%s9] sm:$0x1]
    %11 = vrot.lane.b32.xlu0 %v10, 4
    %v12 = vpop.permute.xlu0 %11
    %vm13 = vcmask 64544
    %14 = vst.msk [vmem:[#allocation0] sm:$0x1] %vm13, %v12
    %s16 = ssub.s32 2, 1
    %v17 = vld [vmem:[#allocation0] sm:%s16]
    %s19 = ssub.s32 2, 1
    %20 = vst [vmem:[%s1] sm:%s19] %v17

// kernel: spatial_separated_attention.1
$region0: #{spatial_separated_attention.1}
  #allocation0 [shape = 'u32[]', space=smem, size = 0x4, offset = 0x4, fixed_abs, tag = 'smem constant byte address 0x4 - core index']
  #allocation1 [shape = 'u32[72,128]{1,0:T(1,128)}', space=vmem, size = 0x9000, scoped, tag = 'internal scratch']
  %s0 = inlined_call_operand.vmem [shape: f32[8,256], index: 0, kind: input, shape index: {}]
  %s1 = inlined_call_operand.vmem [shape: f32[2,256], index: 1, kind: input, shape index: {}]
  %s2 = inlined_call_operand.vmem [shape: f32[24,16], index: 2, kind: input, shape index: {}]
  %s3 = inlined_call_operand.vmem [shape: f32[24,1], index: 3, kind: input, shape index: {}]
  %s4 = inlined_call_operand.vmem [shape: bf16[8,72], index: 4, kind: input, shape index: {}]
  %s5 = inlined_call_operand.vmem [shape: f32[8,1], index: 5, kind: input, shape index: {}]
  %s6 = inlined_call_operand.vmem [shape: f32[8,1], index: 6, kind: input, shape index: {}]
  %s7 = inlined_call_operand.vmem [shape: bf16[4,72], index: 7, kind: input, shape index: {}]
  %s8 = inlined_call_operand.vmem [shape: f32[4,1], index: 8, kind: input, shape index: {}]
  %s9 = inlined_call_operand.vmem [shape: f32[4,1], index: 9, kind: input, shape index: {}]
  %s10 = inlined_call_operand.vmem [shape: f32[9,512], index: 10, kind: input, shape index: {}]
  %s11 = inlined_call_operand.vmem [shape: f32[8,256], index: 11, kind: output, shape index: {}]
  %s12 = sld [smem:[#allocation0]]
  $region54: #{spatial_separated_attention.1} parent=0
    _
  %s14 = ssub.s32 1, %s12
  %s15 = scalar_select 0, %s14, %s12
  // Predicated region
  $region2: #{spatial_separated_attention.1} parent=0 // pred_check
    _
  $region3: #{spatial_separated_attention.1} parent=0 // pred_check_branch
    %17 = sbr.rel (0) target = $region5
  $region4: #{spatial_separated_attention.1} parent=0 // pred_region
    _
  $region5: #{spatial_separated_attention.1} parent=0 // pred_fallthru
    _
  // Predicated region
  $region6: #{spatial_separated_attention.1} parent=0 // pred_check
    _
  $region7: #{spatial_separated_attention.1} parent=0 // pred_check_branch
    %19 = sbr.rel (0) target = $region9
  $region8: #{spatial_separated_attention.1} parent=0 // pred_region
    _
  $region9: #{spatial_separated_attention.1} parent=0 // pred_fallthru
    _
  // Predicated region
  $region10: #{spatial_separated_attention.1} parent=0 // pred_check
    _
  $region11: #{spatial_separated_attention.1} parent=0 // pred_check_branch
    %21 = sbr.rel (0) target = $region13
  $region12: #{spatial_separated_attention.1} parent=0 // pred_region
    _
  $region13: #{spatial_separated_attention.1} parent=0 // pred_fallthru
    _
  // Predicated region
  $region14: #{spatial_separated_attention.1} parent=0 // pred_check
    _
  $region15: #{spatial_separated_attention.1} parent=0 // pred_check_branch
    %23 = sbr.rel (0) target = $region17
  $region16: #{spatial_separated_attention.1} parent=0 // pred_region
    _
  $region17: #{spatial_separated_attention.1} parent=0 // pred_fallthru
    _
  // Predicated region
  $region18: #{spatial_separated_attention.1} parent=0 // pred_check
    _
  $region19: #{spatial_separated_attention.1} parent=0 // pred_check_branch
    %25 = sbr.rel (0) target = $region21
  $region20: #{spatial_separated_attention.1} parent=0 // pred_region
    _
  $region21: #{spatial_separated_attention.1} parent=0 // pred_fallthru
    _
  // Predicated region
  $region22: #{spatial_separated_attention.1} parent=0 // pred_check
    _
  $region23: #{spatial_separated_attention.1} parent=0 // pred_check_branch
    %27 = sbr.rel (0) target = $region25
  $region24: #{spatial_separated_attention.1} parent=0 // pred_region
    _
  $region25: #{spatial_separated_attention.1} parent=0 // pred_fallthru
    _
  // Predicated region
  $region26: #{spatial_separated_attention.1} parent=0 // pred_check
    _
  $region27: #{spatial_separated_attention.1} parent=0 // pred_check_branch
    %29 = sbr.rel (0) target = $region29
  $region28: #{spatial_separated_attention.1} parent=0 // pred_region
    _
  $region29: #{spatial_separated_attention.1} parent=0 // pred_fallthru
    _
  // Predicated region
  $region30: #{spatial_separated_attention.1} parent=0 // pred_check
    _
  $region31: #{spatial_separated_attention.1} parent=0 // pred_check_branch
    %31 = sbr.rel (0) target = $region33
  $region32: #{spatial_separated_attention.1} parent=0 // pred_region
    _
  $region33: #{spatial_separated_attention.1} parent=0 // pred_fallthru
    _
  // Predicated region
  $region34: #{spatial_separated_attention.1} parent=0 // pred_check
    _
  $region35: #{spatial_separated_attention.1} parent=0 // pred_check_branch
    %33 = sbr.rel (0) target = $region37
  $region36: #{spatial_separated_attention.1} parent=0 // pred_region
    _
  $region37: #{spatial_separated_attention.1} parent=0 // pred_fallthru
    _
  // Predicated region
  $region38: #{spatial_separated_attention.1} parent=0 // pred_check
    _
  $region39: #{spatial_separated_attention.1} parent=0 // pred_check_branch
    %35 = sbr.rel (0) target = $region41
  $region40: #{spatial_separated_attention.1} parent=0 // pred_region
    _
  $region41: #{spatial_separated_attention.1} parent=0 // pred_fallthru
    _
  // Predicated region
  $region42: #{spatial_separated_attention.1} parent=0 // pred_check
    _
  $region43: #{spatial_separated_attention.1} parent=0 // pred_check_branch
    %37 = sbr.rel (0) target = $region45
  $region44: #{spatial_separated_attention.1} parent=0 // pred_region
    _
  $region45: #{spatial_separated_attention.1} parent=0 // pred_fallthru
    _
  %v39 = vld [vmem:[%s0] sm:$0xff]
  %v40 = vld [vmem:[%s0 + $0x8] sm:$0xff]
  %v41 = vld [vmem:[%s10] sm:$0xff]
  %v42 = vld [vmem:[%s10 + $0x8] sm:$0xff]
  %v43 = vld [vmem:[%s10 + $0x10] sm:$0xff]
  %v44 = vld [vmem:[%s10 + $0x18] sm:$0xff]
  %v45 = vld [vmem:[%s10 + $0x20] sm:$0x1]
  %v46 = vld [vmem:[%s10 + $0x28] sm:$0x1]
  %v47 = vld [vmem:[%s10 + $0x30] sm:$0x1]
  %v48 = vld [vmem:[%s10 + $0x38] sm:$0x1]
  %v49 = vmax.f32 %v39, %v40
  %50 = vmax.xlane.f32.xlu0 %v49
  %v51 = vpop.xlane.xlu0 %50
  %v52 = vadd.f32 %v39, %v40
  %53 = vadd.xlane.f32.xlu0 %v52
  %v54 = vpop.xlane.xlu0 %53
  %v55 = vrcp.pop 256.0
  %v56 = vmul.f32 256.0, %v55
  %v57 = vsub.f32 1.0, %v56
  %v58 = vmul.f32 %v55, %v57
  %v59 = vadd.f32 %v55, %v58
  %vm60 = vweird.f32 %v55
  %v61 = vsel %vm60, %v55, %v59
  %v62 = vmul.f32 %v54, %v61
  %64 = vset.pattern.permute.xlu0 0
  %65 = vperm.xlu0 %64, %v51
  %v66 = vpop.permute.xlu0 %65
  %69 = vset.pattern.permute.xlu0 0
  %70 = vperm.xlu0 %69, %v62
  %v71 = vpop.permute.xlu0 %70
  %v73 = vld [vmem:[%s2] sm:$0xff]
  %v74 = vld [vmem:[%s2 + $0x8] sm:$0xff]
  %v75 = vld [vmem:[%s2 + $0x10] sm:$0xff]
  %vm76 = vcmask 130048
  %v78 = vsel %vm76, %v73, 0
  %v81 = vsel %vm76, %v74, 0
  %v84 = vsel %vm76, %v75, 0
  %86 = vmatpush.msra.mxu0 0.0
  %87 = vmatpush.msra.mxu0 0.0
  %88 = vmatpush.msra.mxu0 0.0
  %89 = vmatpush.msra.mxu0 0.0
  %90 = vmatpush.msra.mxu0 0.0
  %91 = vmatpush.msra.mxu0 0.0
  %92 = vmatpush.msra.mxu0 0.0
  %93 = vmatpush.msra.mxu0 0.0
  %94 = vmatpush.msra.mxu0 0.0
  %95 = vmatpush.msra.mxu0 0.0
  %96 = vmatpush.msra.mxu0 0.0
  %97 = vmatpush.msra.mxu0 0.0
  %98 = vmatpush.msra.mxu0 0.0
  %99 = vmatpush.msra.mxu0 0.0
  %100 = vmatpush.msra.mxu0 %v71
  %101 = vmatpush.msra.mxu0 %v66
  %102 = vmatmul.f32.gmra.mxu0 %v78
  %v103 = vpop.f32.mrf.mxu0
  %v104 = vadd.f32 0.0, %v103
  %105 = vmatmul.f32.gmra.mxu0 %v81
  %v106 = vpop.f32.mrf.mxu0
  %v107 = vadd.f32 0.0, %v106
  %108 = vmatmul.f32.gmra.mxu0 %v84
  %v109 = vpop.f32.mrf.mxu0
  %v110 = vadd.f32 0.0, %v109
  %111 = vdwg.mxu0
  %v112 = vld [vmem:[%s3] sm:$0xff]
  %v113 = vld [vmem:[%s3 + $0x8] sm:$0xff]
  %v114 = vld [vmem:[%s3 + $0x10] sm:$0xff]
  %v115 = vadd.f32 %v104, %v112
  %v116 = vadd.f32 %v107, %v113
  %v117 = vadd.f32 %v110, %v114
  %v118 = vxor.u32 %v115, 2147483648
  %v119 = vxor.u32 %v116, 2147483648
  %v120 = vxor.u32 %v117, 2147483648
  %v121 = vmul.f32 %v118, 1.442695
  %v122 = vpow.pop %v121
  %v123 = vmul.f32 %v119, 1.442695
  %v124 = vpow.pop %v123
  %v125 = vmul.f32 %v120, 1.442695
  %v126 = vpow.pop %v125
  %v127 = vadd.f32 %v122, 1.0
  %v128 = vadd.f32 %v124, 1.0
  %v129 = vadd.f32 %v126, 1.0
  %v130 = vrcp.pop %v127
  %v131 = vmul.f32 %v127, %v130
  %v132 = vsub.f32 1.0, %v131
  %v133 = vmul.f32 %v130, %v132
  %v134 = vadd.f32 %v130, %v133
  %vm135 = vweird.f32 %v127
  %vm136 = vweird.f32 %v130
  %vm137 = vmor %vm135, %vm136
  %v138 = vsel %vm137, %v130, %v134
  %v139 = vand.u32 2147483647, %v127
  %vm140 = vcmp.eq.f32.partialorder %v139, 8.507059e+37
  %v141 = vand.u32 %v127, 2147483648
  %v142 = vor.u32 1.1754944e-38, %v141
  %v143 = vsel %vm140, %v142, %v138
  %v144 = vmul.f32 1.0, %v143
  %v145 = vrcp.pop %v128
  %v146 = vmul.f32 %v128, %v145
  %v147 = vsub.f32 1.0, %v146
  %v148 = vmul.f32 %v145, %v147
  %v149 = vadd.f32 %v145, %v148
  %vm150 = vweird.f32 %v128
  %vm151 = vweird.f32 %v145
  %vm152 = vmor %vm150, %vm151
  %v153 = vsel %vm152, %v145, %v149
  %v154 = vand.u32 2147483647, %v128
  %vm155 = vcmp.eq.f32.partialorder %v154, 8.507059e+37
  %v156 = vand.u32 %v128, 2147483648
  %v157 = vor.u32 1.1754944e-38, %v156
  %v158 = vsel %vm155, %v157, %v153
  %v159 = vmul.f32 1.0, %v158
  %v160 = vrcp.pop %v129
  %v161 = vmul.f32 %v129, %v160
  %v162 = vsub.f32 1.0, %v161
  %v163 = vmul.f32 %v160, %v162
  %v164 = vadd.f32 %v160, %v163
  %vm165 = vweird.f32 %v129
  %vm166 = vweird.f32 %v160
  %vm167 = vmor %vm165, %vm166
  %v168 = vsel %vm167, %v160, %v164
  %v169 = vand.u32 2147483647, %v129
  %vm170 = vcmp.eq.f32.partialorder %v169, 8.507059e+37
  %v171 = vand.u32 %v129, 2147483648
  %v172 = vor.u32 1.1754944e-38, %v171
  %v173 = vsel %vm170, %v172, %v168
  %v174 = vmul.f32 1.0, %v173
  %176 = vset.pattern.permute.xlu0 0
  %177 = vperm.xlu0 %176, %v159
  %v178 = vpop.permute.xlu0 %177
  %v180 = vmul.f32 %v178, %v39
  %v181 = vmul.f32 %v178, %v40
  %v184 = vrot.slane %v180, 4
  %v185 = vrot.slane %v181, 4
  %vm188 = vcmask 1043456
  %v189 = vsel %vm188, %v180, 0.0
  %v190 = vsel %vm188, %v181, 0.0
  %v191 = vsel %vm188, %v184, 0.0
  %v192 = vsel %vm188, %v185, 0.0
  %v193 = vld [vmem:[%s4] sm:$0xf]
  %195 = vrot.lane.b32.xlu0 %v192, 17
  %v196 = vpop.permute.xlu0 %195
  %201 = vrot.lane.b32.xlu0 %v189, 17
  %v202 = vpop.permute.xlu0 %201
  %203 = vrot.lane.b32.xlu0 %v190, 17
  %v204 = vpop.permute.xlu0 %203
  %205 = vrot.lane.b32.xlu0 %v191, 17
  %v206 = vpop.permute.xlu0 %205
  %vm207 = vcmask 138240
  %v208 = vsel %vm207, %v202, %v204
  %v209 = vsel %vm207, %v204, %v206
  %v210 = vsel %vm207, %v206, %v196
  %v215 = vsel %vm207, %v196, %v202
  %v216 = vperm.slane %v41, 0
  %v217 = vperm.slane %v42, 0
  %v218 = vperm.slane %v43, 0
  %v219 = vperm.slane %v44, 0
  %v220 = vmul.f32 %v215, %v216
  %v221 = vmul.f32 %v208, %v217
  %v222 = vmul.f32 %v209, %v218
  %v223 = vmul.f32 %v210, %v219
  %v224 = vpack.c.bf16 %v221, %v220
  %v225 = vpack.c.bf16 %v223, %v222
  %226 = vrot.lane.b32.xlu0 %v192, 16
  %v227 = vpop.permute.xlu0 %226
  %229 = vrot.lane.b32.xlu0 %v189, 16
  %v230 = vpop.permute.xlu0 %229
  %231 = vrot.lane.b32.xlu0 %v190, 16
  %v232 = vpop.permute.xlu0 %231
  %233 = vrot.lane.b32.xlu0 %v191, 16
  %v234 = vpop.permute.xlu0 %233
  %v235 = vsel %vm76, %v230, %v232
  %v236 = vsel %vm76, %v232, %v234
  %v237 = vsel %vm76, %v234, %v227
  %v242 = vsel %vm76, %v227, %v230
  %v243 = vperm.slane %v41, 1
  %v244 = vperm.slane %v42, 1
  %v245 = vperm.slane %v43, 1
  %v246 = vperm.slane %v44, 1
  %v247 = vmul.f32 %v242, %v243
  %v248 = vmul.f32 %v235, %v244
  %v249 = vmul.f32 %v236, %v245
  %v250 = vmul.f32 %v237, %v246
  %v251 = vpack.c.bf16 %v248, %v247
  %v252 = vpack.c.bf16 %v250, %v249
  %253 = vrot.lane.b32.xlu0 %v192, 15
  %v254 = vpop.permute.xlu0 %253
  %256 = vrot.lane.b32.xlu0 %v189, 15
  %v257 = vpop.permute.xlu0 %256
  %258 = vrot.lane.b32.xlu0 %v190, 15
  %v259 = vpop.permute.xlu0 %258
  %260 = vrot.lane.b32.xlu0 %v191, 15
  %v261 = vpop.permute.xlu0 %260
  %vm262 = vcmask 121856
  %v263 = vsel %vm262, %v257, %v259
  %v264 = vsel %vm262, %v259, %v261
  %v265 = vsel %vm262, %v261, %v254
  %v270 = vsel %vm262, %v254, %v257
  %v271 = vperm.slane %v41, 2
  %v272 = vperm.slane %v42, 2
  %v273 = vperm.slane %v43, 2
  %v274 = vperm.slane %v44, 2
  %v275 = vmul.f32 %v270, %v271
  %v276 = vmul.f32 %v263, %v272
  %v277 = vmul.f32 %v264, %v273
  %v278 = vmul.f32 %v265, %v274
  %v279 = vpack.c.bf16 %v276, %v275
  %v280 = vpack.c.bf16 %v278, %v277
  %281 = vrot.lane.b32.xlu0 %v192, 1
  %v282 = vpop.permute.xlu0 %281
  %284 = vrot.lane.b32.xlu0 %v189, 1
  %v285 = vpop.permute.xlu0 %284
  %286 = vrot.lane.b32.xlu0 %v190, 1
  %v287 = vpop.permute.xlu0 %286
  %288 = vrot.lane.b32.xlu0 %v191, 1
  %v289 = vpop.permute.xlu0 %288
  %vm290 = vcmask 7168
  %v291 = vsel %vm290, %v285, %v287
  %v292 = vsel %vm290, %v287, %v289
  %v293 = vsel %vm290, %v289, %v282
  %v298 = vsel %vm290, %v282, %v285
  %v299 = vperm.slane %v41, 3
  %v300 = vperm.slane %v42, 3
  %v301 = vperm.slane %v43, 3
  %v302 = vperm.slane %v44, 3
  %v303 = vmul.f32 %v298, %v299
  %v304 = vmul.f32 %v291, %v300
  %v305 = vmul.f32 %v292, %v301
  %v306 = vmul.f32 %v293, %v302
  %v307 = vpack.c.bf16 %v304, %v303
  %v308 = vpack.c.bf16 %v306, %v305
  %v309 = vpack.c.bf16 %v190, %v189
  %v310 = vpack.c.bf16 %v192, %v191
  %311 = vrot.lane.b32.xlu0 %v189, 127
  %v312 = vpop.permute.xlu0 %311
  %313 = vrot.lane.b32.xlu0 %v190, 127
  %v314 = vpop.permute.xlu0 %313
  %315 = vrot.lane.b32.xlu0 %v191, 127
  %v316 = vpop.permute.xlu0 %315
  %317 = vrot.lane.b32.xlu0 %v192, 127
  %v318 = vpop.permute.xlu0 %317
  %vm319 = vcmask 1039360
  %v320 = vsel %vm319, %v312, %v314
  %v321 = vsel %vm319, %v314, %v316
  %v322 = vsel %vm319, %v316, %v318
  %v328 = vsel %vm319, %v318, %v312
  %v329 = vperm.slane %v41, 5
  %v330 = vperm.slane %v42, 5
  %v331 = vperm.slane %v43, 5
  %v332 = vperm.slane %v44, 5
  %v333 = vmul.f32 %v320, %v329
  %v334 = vmul.f32 %v321, %v330
  %v335 = vmul.f32 %v322, %v331
  %v336 = vmul.f32 %v328, %v332
  %v337 = vpack.c.bf16 %v334, %v333
  %v338 = vpack.c.bf16 %v336, %v335
  %339 = vrot.lane.b32.xlu0 %v189, 113
  %v340 = vpop.permute.xlu0 %339
  %341 = vrot.lane.b32.xlu0 %v190, 113
  %v342 = vpop.permute.xlu0 %341
  %343 = vrot.lane.b32.xlu0 %v191, 113
  %v344 = vpop.permute.xlu0 %343
  %345 = vrot.lane.b32.xlu0 %v192, 113
  %v346 = vpop.permute.xlu0 %345
  %vm347 = vcmask 924672
  %v348 = vsel %vm347, %v340, %v342
  %v349 = vsel %vm347, %v342, %v344
  %v350 = vsel %vm347, %v344, %v346
  %v356 = vsel %vm347, %v346, %v340
  %v357 = vperm.slane %v41, 6
  %v358 = vperm.slane %v42, 6
  %v359 = vperm.slane %v43, 6
  %v360 = vperm.slane %v44, 6
  %v361 = vmul.f32 %v348, %v357
  %v362 = vmul.f32 %v349, %v358
  %v363 = vmul.f32 %v350, %v359
  %v364 = vmul.f32 %v356, %v360
  %v365 = vpack.c.bf16 %v362, %v361
  %v366 = vpack.c.bf16 %v364, %v363
  %367 = vrot.lane.b32.xlu0 %v189, 112
  %v368 = vpop.permute.xlu0 %367
  %369 = vrot.lane.b32.xlu0 %v190, 112
  %v370 = vpop.permute.xlu0 %369
  %371 = vrot.lane.b32.xlu0 %v191, 112
  %v372 = vpop.permute.xlu0 %371
  %373 = vrot.lane.b32.xlu0 %v192, 112
  %v374 = vpop.permute.xlu0 %373
  %vm375 = vcmask 916480
  %v376 = vsel %vm375, %v368, %v370
  %v377 = vsel %vm375, %v370, %v372
  %v378 = vsel %vm375, %v372, %v374
  %v384 = vsel %vm375, %v374, %v368
  %v385 = vperm.slane %v41, 7
  %v386 = vperm.slane %v42, 7
  %v387 = vperm.slane %v43, 7
  %v388 = vperm.slane %v44, 7
  %v389 = vmul.f32 %v376, %v385
  %v390 = vmul.f32 %v377, %v386
  %v391 = vmul.f32 %v378, %v387
  %v392 = vmul.f32 %v384, %v388
  %v393 = vpack.c.bf16 %v390, %v389
  %v394 = vpack.c.bf16 %v392, %v391
  %395 = vrot.lane.b32.xlu0 %v189, 111
  %v396 = vpop.permute.xlu0 %395
  %397 = vrot.lane.b32.xlu0 %v190, 111
  %v398 = vpop.permute.xlu0 %397
  %399 = vrot.lane.b32.xlu0 %v191, 111
  %v400 = vpop.permute.xlu0 %399
  %401 = vrot.lane.b32.xlu0 %v192, 111
  %v402 = vpop.permute.xlu0 %401
  %vm403 = vcmask 908288
  %v404 = vsel %vm403, %v396, %v398
  %v405 = vsel %vm403, %v398, %v400
  %v406 = vsel %vm403, %v400, %v402
  %v412 = vsel %vm403, %v402, %v396
  %v413 = vperm.slane %v45, 0
  %v414 = vperm.slane %v46, 0
  %v415 = vperm.slane %v47, 0
  %v416 = vperm.slane %v48, 0
  %v417 = vmul.f32 %v404, %v413
  %v418 = vmul.f32 %v405, %v414
  %v419 = vmul.f32 %v406, %v415
  %v420 = vmul.f32 %v412, %v416
  %v421 = vpack.c.bf16 %v418, %v417
  %v422 = vpack.c.bf16 %v420, %v419
  %v425 = vunpack.c.l.b16 %v224
  %v426 = vunpack.c.h.b16 %v224
  %v427 = vunpack.c.l.b16 %v225
  %v428 = vunpack.c.h.b16 %v225
  %v429 = vpack.c.b16 %v425, %v425
  %v430 = vpack.c.b16 %v426, %v426
  %v431 = vpack.c.b16 %v427, %v427
  %v432 = vpack.c.b16 %v428, %v428
  %v435 = vunpack.c.l.b16 %v251
  %v436 = vunpack.c.h.b16 %v251
  %v437 = vunpack.c.l.b16 %v252
  %v438 = vunpack.c.h.b16 %v252
  %v439 = vpack.c.b16 %v435, %v435
  %v440 = vpack.c.b16 %v436, %v436
  %v441 = vpack.c.b16 %v437, %v437
  %v442 = vpack.c.b16 %v438, %v438
  %v445 = vunpack.c.l.b16 %v279
  %v446 = vunpack.c.h.b16 %v279
  %v447 = vunpack.c.l.b16 %v280
  %v448 = vunpack.c.h.b16 %v280
  %v449 = vpack.c.b16 %v445, %v445
  %v450 = vpack.c.b16 %v446, %v446
  %v451 = vpack.c.b16 %v447, %v447
  %v452 = vpack.c.b16 %v448, %v448
  %v455 = vunpack.c.l.b16 %v307
  %v456 = vunpack.c.h.b16 %v307
  %v457 = vunpack.c.l.b16 %v308
  %v458 = vunpack.c.h.b16 %v308
  %v459 = vpack.c.b16 %v455, %v455
  %v460 = vpack.c.b16 %v456, %v456
  %v461 = vpack.c.b16 %v457, %v457
  %v462 = vpack.c.b16 %v458, %v458
  %v465 = vunpack.c.l.b16 %v309
  %v466 = vunpack.c.h.b16 %v309
  %v467 = vunpack.c.l.b16 %v310
  %v468 = vunpack.c.h.b16 %v310
  %v469 = vpack.c.b16 %v465, %v465
  %v470 = vpack.c.b16 %v466, %v466
  %v471 = vpack.c.b16 %v467, %v467
  %v472 = vpack.c.b16 %v468, %v468
  %v475 = vunpack.c.l.b16 %v337
  %v476 = vunpack.c.h.b16 %v337
  %v477 = vunpack.c.l.b16 %v338
  %v478 = vunpack.c.h.b16 %v338
  %v479 = vpack.c.b16 %v475, %v475
  %v480 = vpack.c.b16 %v476, %v476
  %v481 = vpack.c.b16 %v477, %v477
  %v482 = vpack.c.b16 %v478, %v478
  %v485 = vunpack.c.l.b16 %v365
  %v486 = vunpack.c.h.b16 %v365
  %v487 = vunpack.c.l.b16 %v366
  %v488 = vunpack.c.h.b16 %v366
  %v489 = vpack.c.b16 %v485, %v485
  %v490 = vpack.c.b16 %v486, %v486
  %v491 = vpack.c.b16 %v487, %v487
  %v492 = vpack.c.b16 %v488, %v488
  %v495 = vunpack.c.l.b16 %v393
  %v496 = vunpack.c.h.b16 %v393
  %v497 = vunpack.c.l.b16 %v394
  %v498 = vunpack.c.h.b16 %v394
  %v499 = vpack.c.b16 %v495, %v495
  %v500 = vpack.c.b16 %v496, %v496
  %v501 = vpack.c.b16 %v497, %v497
  %v502 = vpack.c.b16 %v498, %v498
  %v505 = vunpack.c.l.b16 %v421
  %v506 = vunpack.c.h.b16 %v421
  %v507 = vunpack.c.l.b16 %v422
  %v508 = vunpack.c.h.b16 %v422
  %v509 = vpack.c.b16 %v505, %v505
  %v510 = vpack.c.b16 %v506, %v506
  %v511 = vpack.c.b16 %v507, %v507
  %v512 = vpack.c.b16 %v508, %v508
  %v515 = vsel %vm188, %v429, %v439
  %v519 = vsel %vm188, %v430, %v440
  %v523 = vsel %vm188, %v431, %v441
  %v527 = vsel %vm188, %v432, %v442
  %v531 = vsel %vm188, %v449, %v459
  %v535 = vsel %vm188, %v450, %v460
  %v539 = vsel %vm188, %v451, %v461
  %v543 = vsel %vm188, %v452, %v462
  %v547 = vsel %vm188, %v469, %v479
  %v551 = vsel %vm188, %v470, %v480
  %v555 = vsel %vm188, %v471, %v481
  %v559 = vsel %vm188, %v472, %v482
  %v563 = vsel %vm188, %v489, %v499
  %v567 = vsel %vm188, %v490, %v500
  %v571 = vsel %vm188, %v491, %v501
  %v575 = vsel %vm188, %v492, %v502
  %vm577 = vcmask 588800
  %v579 = vsel %vm577, %v193, 0
  %v582 = vsel %vm188, %v509, 0
  %v585 = vsel %vm188, %v510, 0
  %v588 = vsel %vm188, %v511, 0
  %v591 = vsel %vm188, %v512, 0
  %593 = vmatpush.bf16.msra.mxu0 0
  %594 = vmatpush.bf16.msra.mxu0 0
  %595 = vmatpush.bf16.msra.mxu0 0
  %596 = vmatpush.bf16.msra.mxu0 %v582
  %597 = vmatpush.bf16.msra.mxu0 %v563
  %598 = vmatpush.bf16.msra.mxu0 %v547
  %599 = vmatpush.bf16.msra.mxu0 %v531
  %600 = vmatpush.bf16.msra.mxu0 %v515
  %601 = vmatmul.bf16.gmra.mxu0 %v579
  %v602 = vpop.f32.mrf.mxu0
  %v603 = vadd.f32 0.0, %v602
  %v604 = vpop.f32.mrf.mxu0
  %605 = vdwg.mxu0
  %606 = vmatpush.bf16.msra.mxu0 0
  %607 = vmatpush.bf16.msra.mxu0 0
  %608 = vmatpush.bf16.msra.mxu0 0
  %609 = vmatpush.bf16.msra.mxu0 %v585
  %610 = vmatpush.bf16.msra.mxu0 %v567
  %611 = vmatpush.bf16.msra.mxu0 %v551
  %612 = vmatpush.bf16.msra.mxu0 %v535
  %613 = vmatpush.bf16.msra.mxu0 %v519
  %614 = vmatmul.bf16.gmra.mxu0 %v579
  %v615 = vpop.f32.mrf.mxu0
  %v616 = vadd.f32 0.0, %v615
  %v617 = vpop.f32.mrf.mxu0
  %618 = vdwg.mxu0
  %619 = vmatpush.bf16.msra.mxu0 0
  %620 = vmatpush.bf16.msra.mxu0 0
  %621 = vmatpush.bf16.msra.mxu0 0
  %622 = vmatpush.bf16.msra.mxu0 %v588
  %623 = vmatpush.bf16.msra.mxu0 %v571
  %624 = vmatpush.bf16.msra.mxu0 %v555
  %625 = vmatpush.bf16.msra.mxu0 %v539
  %626 = vmatpush.bf16.msra.mxu0 %v523
  %627 = vmatmul.bf16.gmra.mxu0 %v579
  %v628 = vpop.f32.mrf.mxu0
  %v629 = vadd.f32 0.0, %v628
  %v630 = vpop.f32.mrf.mxu0
  %631 = vdwg.mxu0
  %632 = vmatpush.bf16.msra.mxu0 0
  %633 = vmatpush.bf16.msra.mxu0 0
  %634 = vmatpush.bf16.msra.mxu0 0
  %635 = vmatpush.bf16.msra.mxu0 %v591
  %636 = vmatpush.bf16.msra.mxu0 %v575
  %637 = vmatpush.bf16.msra.mxu0 %v559
  %638 = vmatpush.bf16.msra.mxu0 %v543
  %639 = vmatpush.bf16.msra.mxu0 %v527
  %640 = vmatmul.bf16.gmra.mxu0 %v579
  %v641 = vpop.f32.mrf.mxu0
  %v642 = vadd.f32 0.0, %v641
  %v643 = vpop.f32.mrf.mxu0
  %644 = vdwg.mxu0
  %v645 = vld [vmem:[%s5] sm:$0xff]
  %v646 = vld [vmem:[%s6] sm:$0xff]
  %648 = vset.pattern.permute.xlu0 0
  %649 = vperm.xlu0 %648, %v645
  %v650 = vpop.permute.xlu0 %649
  %v652 = vmul.f32 %v603, %v650
  %v653 = vmul.f32 %v616, %v650
  %v654 = vmul.f32 %v629, %v650
  %v655 = vmul.f32 %v642, %v650
  %657 = vset.pattern.permute.xlu0 0
  %658 = vperm.xlu0 %657, %v646
  %v659 = vpop.permute.xlu0 %658
  %v661 = vadd.f32 %v652, %v659
  %v662 = vadd.f32 %v653, %v659
  %v663 = vadd.f32 %v654, %v659
  %v664 = vadd.f32 %v655, %v659
  %vm665 = vcmp.gt.f32.partialorder %v661, 0.0
  %vm666 = vcmp.gt.f32.partialorder %v662, 0.0
  %vm667 = vcmp.gt.f32.partialorder %v663, 0.0
  %vm668 = vcmp.gt.f32.partialorder %v664, 0.0
  %v669 = vmin.f32 %v661, 0.0
  %v670 = vmin.f32 %v662, 0.0
  %v671 = vmin.f32 %v663, 0.0
  %v672 = vmin.f32 %v664, 0.0
  %v673 = vmul.f32 %v669, 1.442695
  %v674 = vpow.pop %v673
  %v675 = vmul.f32 %v670, 1.442695
  %v676 = vpow.pop %v675
  %v677 = vmul.f32 %v671, 1.442695
  %v678 = vpow.pop %v677
  %v679 = vmul.f32 %v672, 1.442695
  %v680 = vpow.pop %v679
  %v681 = vsub.f32 %v674, 1.0
  %v682 = vsub.f32 %v676, 1.0
  %v683 = vsub.f32 %v678, 1.0
  %v684 = vsub.f32 %v680, 1.0
  %v685 = vsel %vm665, %v661, %v681
  %v686 = vsel %vm666, %v662, %v682
  %v687 = vsel %vm667, %v663, %v683
  %v688 = vsel %vm668, %v664, %v684
  %v689 = vld [vmem:[%s7] sm:$0x3]
  %691 = vrot.lane.b32.xlu0 %v688, 17
  %v692 = vpop.permute.xlu0 %691
  %697 = vrot.lane.b32.xlu0 %v685, 17
  %v698 = vpop.permute.xlu0 %697
  %699 = vrot.lane.b32.xlu0 %v686, 17
  %v700 = vpop.permute.xlu0 %699
  %701 = vrot.lane.b32.xlu0 %v687, 17
  %v702 = vpop.permute.xlu0 %701
  %v703 = vsel %vm207, %v698, %v700
  %v704 = vsel %vm207, %v700, %v702
  %v705 = vsel %vm207, %v702, %v692
  %v710 = vsel %vm207, %v692, %v698
  %v711 = vmul.f32 %v710, %v216
  %v712 = vmul.f32 %v703, %v217
  %v713 = vmul.f32 %v704, %v218
  %v714 = vmul.f32 %v705, %v219
  %v715 = vpack.c.bf16 %v712, %v711
  %v716 = vpack.c.bf16 %v714, %v713
  %717 = vrot.lane.b32.xlu0 %v688, 16
  %v718 = vpop.permute.xlu0 %717
  %720 = vrot.lane.b32.xlu0 %v685, 16
  %v721 = vpop.permute.xlu0 %720
  %722 = vrot.lane.b32.xlu0 %v686, 16
  %v723 = vpop.permute.xlu0 %722
  %724 = vrot.lane.b32.xlu0 %v687, 16
  %v725 = vpop.permute.xlu0 %724
  %v726 = vsel %vm76, %v721, %v723
  %v727 = vsel %vm76, %v723, %v725
  %v728 = vsel %vm76, %v725, %v718
  %v733 = vsel %vm76, %v718, %v721
  %v734 = vmul.f32 %v733, %v243
  %v735 = vmul.f32 %v726, %v244
  %v736 = vmul.f32 %v727, %v245
  %v737 = vmul.f32 %v728, %v246
  %v738 = vpack.c.bf16 %v735, %v734
  %v739 = vpack.c.bf16 %v737, %v736
  %740 = vrot.lane.b32.xlu0 %v688, 15
  %v741 = vpop.permute.xlu0 %740
  %743 = vrot.lane.b32.xlu0 %v685, 15
  %v744 = vpop.permute.xlu0 %743
  %745 = vrot.lane.b32.xlu0 %v686, 15
  %v746 = vpop.permute.xlu0 %745
  %747 = vrot.lane.b32.xlu0 %v687, 15
  %v748 = vpop.permute.xlu0 %747
  %v749 = vsel %vm262, %v744, %v746
  %v750 = vsel %vm262, %v746, %v748
  %v751 = vsel %vm262, %v748, %v741
  %v756 = vsel %vm262, %v741, %v744
  %v757 = vmul.f32 %v756, %v271
  %v758 = vmul.f32 %v749, %v272
  %v759 = vmul.f32 %v750, %v273
  %v760 = vmul.f32 %v751, %v274
  %v761 = vpack.c.bf16 %v758, %v757
  %v762 = vpack.c.bf16 %v760, %v759
  %763 = vrot.lane.b32.xlu0 %v688, 1
  %v764 = vpop.permute.xlu0 %763
  %766 = vrot.lane.b32.xlu0 %v685, 1
  %v767 = vpop.permute.xlu0 %766
  %768 = vrot.lane.b32.xlu0 %v686, 1
  %v769 = vpop.permute.xlu0 %768
  %770 = vrot.lane.b32.xlu0 %v687, 1
  %v771 = vpop.permute.xlu0 %770
  %v772 = vsel %vm290, %v767, %v769
  %v773 = vsel %vm290, %v769, %v771
  %v774 = vsel %vm290, %v771, %v764
  %v779 = vsel %vm290, %v764, %v767
  %v780 = vmul.f32 %v779, %v299
  %v781 = vmul.f32 %v772, %v300
  %v782 = vmul.f32 %v773, %v301
  %v783 = vmul.f32 %v774, %v302
  %v784 = vpack.c.bf16 %v781, %v780
  %v785 = vpack.c.bf16 %v783, %v782
  %v786 = vpack.c.bf16 %v686, %v685
  %v787 = vpack.c.bf16 %v688, %v687
  %788 = vrot.lane.b32.xlu0 %v685, 127
  %v789 = vpop.permute.xlu0 %788
  %790 = vrot.lane.b32.xlu0 %v686, 127
  %v791 = vpop.permute.xlu0 %790
  %792 = vrot.lane.b32.xlu0 %v687, 127
  %v793 = vpop.permute.xlu0 %792
  %794 = vrot.lane.b32.xlu0 %v688, 127
  %v795 = vpop.permute.xlu0 %794
  %v796 = vsel %vm319, %v789, %v791
  %v797 = vsel %vm319, %v791, %v793
  %v798 = vsel %vm319, %v793, %v795
  %v804 = vsel %vm319, %v795, %v789
  %v805 = vmul.f32 %v796, %v329
  %v806 = vmul.f32 %v797, %v330
  %v807 = vmul.f32 %v798, %v331
  %v808 = vmul.f32 %v804, %v332
  %v809 = vpack.c.bf16 %v806, %v805
  %v810 = vpack.c.bf16 %v808, %v807
  %811 = vrot.lane.b32.xlu0 %v685, 113
  %v812 = vpop.permute.xlu0 %811
  %813 = vrot.lane.b32.xlu0 %v686, 113
  %v814 = vpop.permute.xlu0 %813
  %815 = vrot.lane.b32.xlu0 %v687, 113
  %v816 = vpop.permute.xlu0 %815
  %817 = vrot.lane.b32.xlu0 %v688, 113
  %v818 = vpop.permute.xlu0 %817
  %v819 = vsel %vm347, %v812, %v814
  %v820 = vsel %vm347, %v814, %v816
  %v821 = vsel %vm347, %v816, %v818
  %v827 = vsel %vm347, %v818, %v812
  %v828 = vmul.f32 %v819, %v357
  %v829 = vmul.f32 %v820, %v358
  %v830 = vmul.f32 %v821, %v359
  %v831 = vmul.f32 %v827, %v360
  %v832 = vpack.c.bf16 %v829, %v828
  %v833 = vpack.c.bf16 %v831, %v830
  %834 = vrot.lane.b32.xlu0 %v685, 112
  %v835 = vpop.permute.xlu0 %834
  %836 = vrot.lane.b32.xlu0 %v686, 112
  %v837 = vpop.permute.xlu0 %836
  %838 = vrot.lane.b32.xlu0 %v687, 112
  %v839 = vpop.permute.xlu0 %838
  %840 = vrot.lane.b32.xlu0 %v688, 112
  %v841 = vpop.permute.xlu0 %840
  %v842 = vsel %vm375, %v835, %v837
  %v843 = vsel %vm375, %v837, %v839
  %v844 = vsel %vm375, %v839, %v841
  %v850 = vsel %vm375, %v841, %v835
  %v851 = vmul.f32 %v842, %v385
  %v852 = vmul.f32 %v843, %v386
  %v853 = vmul.f32 %v844, %v387
  %v854 = vmul.f32 %v850, %v388
  %v855 = vpack.c.bf16 %v852, %v851
  %v856 = vpack.c.bf16 %v854, %v853
  %857 = vrot.lane.b32.xlu0 %v685, 111
  %v858 = vpop.permute.xlu0 %857
  %859 = vrot.lane.b32.xlu0 %v686, 111
  %v860 = vpop.permute.xlu0 %859
  %861 = vrot.lane.b32.xlu0 %v687, 111
  %v862 = vpop.permute.xlu0 %861
  %863 = vrot.lane.b32.xlu0 %v688, 111
  %v864 = vpop.permute.xlu0 %863
  %v865 = vsel %vm403, %v858, %v860
  %v866 = vsel %vm403, %v860, %v862
  %v867 = vsel %vm403, %v862, %v864
  %v873 = vsel %vm403, %v864, %v858
  %v874 = vmul.f32 %v865, %v413
  %v875 = vmul.f32 %v866, %v414
  %v876 = vmul.f32 %v867, %v415
  %v877 = vmul.f32 %v873, %v416
  %v878 = vpack.c.bf16 %v875, %v874
  %v879 = vpack.c.bf16 %v877, %v876
  %v882 = vunpack.c.l.b16 %v715
  %v883 = vunpack.c.h.b16 %v715
  %v884 = vunpack.c.l.b16 %v716
  %v885 = vunpack.c.h.b16 %v716
  %v886 = vpack.c.b16 %v882, %v882
  %v887 = vpack.c.b16 %v883, %v883
  %v888 = vpack.c.b16 %v884, %v884
  %v889 = vpack.c.b16 %v885, %v885
  %v892 = vunpack.c.l.b16 %v738
  %v893 = vunpack.c.h.b16 %v738
  %v894 = vunpack.c.l.b16 %v739
  %v895 = vunpack.c.h.b16 %v739
  %v896 = vpack.c.b16 %v892, %v892
  %v897 = vpack.c.b16 %v893, %v893
  %v898 = vpack.c.b16 %v894, %v894
  %v899 = vpack.c.b16 %v895, %v895
  %v902 = vunpack.c.l.b16 %v761
  %v903 = vunpack.c.h.b16 %v761
  %v904 = vunpack.c.l.b16 %v762
  %v905 = vunpack.c.h.b16 %v762
  %v906 = vpack.c.b16 %v902, %v902
  %v907 = vpack.c.b16 %v903, %v903
  %v908 = vpack.c.b16 %v904, %v904
  %v909 = vpack.c.b16 %v905, %v905
  %v912 = vunpack.c.l.b16 %v784
  %v913 = vunpack.c.h.b16 %v784
  %v914 = vunpack.c.l.b16 %v785
  %v915 = vunpack.c.h.b16 %v785
  %v916 = vpack.c.b16 %v912, %v912
  %v917 = vpack.c.b16 %v913, %v913
  %v918 = vpack.c.b16 %v914, %v914
  %v919 = vpack.c.b16 %v915, %v915
  %v922 = vunpack.c.l.b16 %v786
  %v923 = vunpack.c.h.b16 %v786
  %v924 = vunpack.c.l.b16 %v787
  %v925 = vunpack.c.h.b16 %v787
  %v926 = vpack.c.b16 %v922, %v922
  %v927 = vpack.c.b16 %v923, %v923
  %v928 = vpack.c.b16 %v924, %v924
  %v929 = vpack.c.b16 %v925, %v925
  %v932 = vunpack.c.l.b16 %v809
  %v933 = vunpack.c.h.b16 %v809
  %v934 = vunpack.c.l.b16 %v810
  %v935 = vunpack.c.h.b16 %v810
  %v936 = vpack.c.b16 %v932, %v932
  %v937 = vpack.c.b16 %v933, %v933
  %v938 = vpack.c.b16 %v934, %v934
  %v939 = vpack.c.b16 %v935, %v935
  %v942 = vunpack.c.l.b16 %v832
  %v943 = vunpack.c.h.b16 %v832
  %v944 = vunpack.c.l.b16 %v833
  %v945 = vunpack.c.h.b16 %v833
  %v946 = vpack.c.b16 %v942, %v942
  %v947 = vpack.c.b16 %v943, %v943
  %v948 = vpack.c.b16 %v944, %v944
  %v949 = vpack.c.b16 %v945, %v945
  %v952 = vunpack.c.l.b16 %v855
  %v953 = vunpack.c.h.b16 %v855
  %v954 = vunpack.c.l.b16 %v856
  %v955 = vunpack.c.h.b16 %v856
  %v956 = vpack.c.b16 %v952, %v952
  %v957 = vpack.c.b16 %v953, %v953
  %v958 = vpack.c.b16 %v954, %v954
  %v959 = vpack.c.b16 %v955, %v955
  %v962 = vunpack.c.l.b16 %v878
  %v963 = vunpack.c.h.b16 %v878
  %v964 = vunpack.c.l.b16 %v879
  %v965 = vunpack.c.h.b16 %v879
  %v966 = vpack.c.b16 %v962, %v962
  %v967 = vpack.c.b16 %v963, %v963
  %v968 = vpack.c.b16 %v964, %v964
  %v969 = vpack.c.b16 %v965, %v965
  %v972 = vsel %vm188, %v886, %v896
  %v976 = vsel %vm188, %v887, %v897
  %v980 = vsel %vm188, %v888, %v898
  %v984 = vsel %vm188, %v889, %v899
  %v988 = vsel %vm188, %v906, %v916
  %v992 = vsel %vm188, %v907, %v917
  %v996 = vsel %vm188, %v908, %v918
  %v1000 = vsel %vm188, %v909, %v919
  %v1004 = vsel %vm188, %v926, %v936
  %v1008 = vsel %vm188, %v927, %v937
  %v1012 = vsel %vm188, %v928, %v938
  %v1016 = vsel %vm188, %v929, %v939
  %v1020 = vsel %vm188, %v946, %v956
  %v1024 = vsel %vm188, %v947, %v957
  %v1028 = vsel %vm188, %v948, %v958
  %v1032 = vsel %vm188, %v949, %v959
  %v1035 = vsel %vm577, %v689, 0
  %v1038 = vsel %vm188, %v966, 0
  %v1041 = vsel %vm188, %v967, 0
  %v1044 = vsel %vm188, %v968, 0
  %v1047 = vsel %vm188, %v969, 0
  %1049 = vmatpush.bf16.msra.mxu0 0
  %1050 = vmatpush.bf16.msra.mxu0 0
  %1051 = vmatpush.bf16.msra.mxu0 0
  %1052 = vmatpush.bf16.msra.mxu0 %v1038
  %1053 = vmatpush.bf16.msra.mxu0 %v1020
  %1054 = vmatpush.bf16.msra.mxu0 %v1004
  %1055 = vmatpush.bf16.msra.mxu0 %v988
  %1056 = vmatpush.bf16.msra.mxu0 %v972
  %1057 = vmatmul.bf16.gmra.mxu0 %v1035
  %v1058 = vpop.f32.mrf.mxu0
  %v1059 = vadd.f32 0.0, %v1058
  %v1060 = vpop.f32.mrf.mxu0
  %1061 = vdwg.mxu0
  %1062 = vmatpush.bf16.msra.mxu0 0
  %1063 = vmatpush.bf16.msra.mxu0 0
  %1064 = vmatpush.bf16.msra.mxu0 0
  %1065 = vmatpush.bf16.msra.mxu0 %v1041
  %1066 = vmatpush.bf16.msra.mxu0 %v1024
  %1067 = vmatpush.bf16.msra.mxu0 %v1008
  %1068 = vmatpush.bf16.msra.mxu0 %v992
  %1069 = vmatpush.bf16.msra.mxu0 %v976
  %1070 = vmatmul.bf16.gmra.mxu0 %v1035
  %v1071 = vpop.f32.mrf.mxu0
  %v1072 = vadd.f32 0.0, %v1071
  %v1073 = vpop.f32.mrf.mxu0
  %1074 = vdwg.mxu0
  %1075 = vmatpush.bf16.msra.mxu0 0
  %1076 = vmatpush.bf16.msra.mxu0 0
  %1077 = vmatpush.bf16.msra.mxu0 0
  %1078 = vmatpush.bf16.msra.mxu0 %v1044
  %1079 = vmatpush.bf16.msra.mxu0 %v1028
  %1080 = vmatpush.bf16.msra.mxu0 %v1012
  %1081 = vmatpush.bf16.msra.mxu0 %v996
  %1082 = vmatpush.bf16.msra.mxu0 %v980
  %1083 = vmatmul.bf16.gmra.mxu0 %v1035
  %v1084 = vpop.f32.mrf.mxu0
  %v1085 = vadd.f32 0.0, %v1084
  %v1086 = vpop.f32.mrf.mxu0
  %1087 = vdwg.mxu0
  %1088 = vmatpush.bf16.msra.mxu0 0
  %1089 = vmatpush.bf16.msra.mxu0 0
  %1090 = vmatpush.bf16.msra.mxu0 0
  %1091 = vmatpush.bf16.msra.mxu0 %v1047
  %1092 = vmatpush.bf16.msra.mxu0 %v1032
  %1093 = vmatpush.bf16.msra.mxu0 %v1016
  %1094 = vmatpush.bf16.msra.mxu0 %v1000
  %1095 = vmatpush.bf16.msra.mxu0 %v984
  %1096 = vmatmul.bf16.gmra.mxu0 %v1035
  %v1097 = vpop.f32.mrf.mxu0
  %v1098 = vadd.f32 0.0, %v1097
  %v1099 = vpop.f32.mrf.mxu0
  %1100 = vdwg.mxu0
  %v1101 = vld [vmem:[%s8] sm:$0xf]
  %v1102 = vld [vmem:[%s9] sm:$0xf]
  %1104 = vset.pattern.permute.xlu0 0
  %1105 = vperm.xlu0 %1104, %v1101
  %v1106 = vpop.permute.xlu0 %1105
  %v1108 = vmul.f32 %v1059, %v1106
  %v1109 = vmul.f32 %v1072, %v1106
  %v1110 = vmul.f32 %v1085, %v1106
  %v1111 = vmul.f32 %v1098, %v1106
  %1113 = vset.pattern.permute.xlu0 0
  %1114 = vperm.xlu0 %1113, %v1102
  %v1115 = vpop.permute.xlu0 %1114
  %v1117 = vadd.f32 %v1108, %v1115
  %v1118 = vadd.f32 %v1109, %v1115
  %v1119 = vadd.f32 %v1110, %v1115
  %v1120 = vadd.f32 %v1111, %v1115
  %vm1121 = vcmp.gt.f32.partialorder %v1117, 0.0
  %vm1122 = vcmp.gt.f32.partialorder %v1118, 0.0
  %vm1123 = vcmp.gt.f32.partialorder %v1119, 0.0
  %vm1124 = vcmp.gt.f32.partialorder %v1120, 0.0
  %v1125 = vmin.f32 %v1117, 0.0
  %v1126 = vmin.f32 %v1118, 0.0
  %v1127 = vmin.f32 %v1119, 0.0
  %v1128 = vmin.f32 %v1120, 0.0
  %v1129 = vmul.f32 %v1125, 1.442695
  %v1130 = vpow.pop %v1129
  %v1131 = vmul.f32 %v1126, 1.442695
  %v1132 = vpow.pop %v1131
  %v1133 = vmul.f32 %v1127, 1.442695
  %v1134 = vpow.pop %v1133
  %v1135 = vmul.f32 %v1128, 1.442695
  %v1136 = vpow.pop %v1135
  %v1137 = vsub.f32 %v1130, 1.0
  %v1138 = vsub.f32 %v1132, 1.0
  %v1139 = vsub.f32 %v1134, 1.0
  %v1140 = vsub.f32 %v1136, 1.0
  %v1141 = vsel %vm1121, %v1117, %v1137
  %v1142 = vsel %vm1122, %v1118, %v1138
  %v1143 = vsel %vm1123, %v1119, %v1139
  %v1144 = vsel %vm1124, %v1120, %v1140
  %v1147 = vrot.slane %v1143, 4
  %v1148 = vrot.slane %v1144, 4
  %v1151 = vsel %vm188, %v1141, %v1147
  %v1152 = vsel %vm188, %v1142, %v1148
  %v1153 = vld [vmem:[%s1] sm:$0xf]
  %v1155 = vperm.slane %v1153, 0
  %v1156 = vperm.slane %v1153, 2
  %v1159 = vperm.slane %v1155, 0
  %v1160 = vperm.slane %v1156, 0
  %v1161 = vperm.slane %v1153, 1
  %v1162 = vperm.slane %v1153, 3
  %v1165 = vperm.slane %v1161, 1
  %v1166 = vperm.slane %v1162, 1
  %v1167 = vsel %vm188, %v1159, %v1165
  %v1168 = vsel %vm188, %v1160, %v1166
  %1170 = vset.pattern.permute.xlu0 0
  %1171 = vperm.xlu0 %1170, %v174
  %v1172 = vpop.permute.xlu0 %1171
  %v1174 = vmul.f32 %v1172, %v39
  %v1175 = vmul.f32 %v1172, %v40
  %v1176 = vadd.f32 %v1151, %v1174
  %v1177 = vadd.f32 %v1152, %v1175
  %v1178 = vmul.f32 %v1167, %v1176
  %v1179 = vmul.f32 %v1168, %v1177
  %v1180 = vsub.f32 1.0, %v1167
  %v1181 = vsub.f32 1.0, %v1168
  %1183 = vset.pattern.permute.xlu0 0
  %1184 = vperm.xlu0 %1183, %v144
  %v1185 = vpop.permute.xlu0 %1184
  %v1187 = vmul.f32 %v1185, %v39
  %v1188 = vmul.f32 %v1185, %v40
  %v1189 = vmul.f32 %v1180, %v1187
  %v1190 = vmul.f32 %v1181, %v1188
  %v1191 = vadd.f32 %v1178, %v1189
  %v1192 = vadd.f32 %v1179, %v1190
  %1193 = vst [vmem:[%s11] sm:$0xff] %v1191
  %1194 = vst [vmem:[%s11 + $0x8] sm:$0xff] %v1192
  // Predicated region
  $region46: #{spatial_separated_attention.1} parent=0 // pred_check
    _
  $region47: #{spatial_separated_attention.1} parent=0 // pred_check_branch
    %1196 = sbr.rel (0) target = $region49
  $region48: #{spatial_separated_attention.1} parent=0 // pred_region
    _
  $region49: #{spatial_separated_attention.1} parent=0 // pred_fallthru
    _
  // Predicated region
  $region50: #{spatial_separated_attention.1} parent=0 // pred_check
    _
  $region51: #{spatial_separated_attention.1} parent=0 // pred_check_branch
    %1198 = sbr.rel (0) target = $region53
  $region52: #{spatial_separated_attention.1} parent=0 // pred_region
    _
  $region53: #{spatial_separated_attention.1} parent=0 // pred_fallthru
    _

</llo_original>
